<compile_context>
chip_gen: v6e
topology: v6e:2x2x1
jax: 0.10.0
libtpu: 0.0.40
codegen_flags: <defaults>
</compile_context>

<pallas_src>
import functools
import math

import jax
import jax.numpy as jnp
from jax.experimental import pallas as pl
from jax.experimental.pallas import tpu as pltpu


def _layernorm(x, gamma, beta, eps=1e-5):
    # x: (N, E) f32; gamma/beta: (1, E) f32.  Biased variance, like torch.
    mean = jnp.mean(x, axis=-1, keepdims=True)
    var = jnp.mean((x - mean) ** 2, axis=-1, keepdims=True)
    inv = jax.lax.rsqrt(var + eps)
    return (x - mean) * inv * gamma + beta


def _split_heads(t, tb, s, h, d):
    # (TB*S, E) f32 -> (TB*H, S, D) bf16
    return (
        t.reshape(tb, s, h, d)
        .transpose(0, 2, 1, 3)
        .reshape(tb * h, s, d)
        .astype(jnp.bfloat16)
    )


def transformer_block_kernel(
    x_ref,            # (TB, S, E)  f32
    wqkv_ref,         # (E, 3E)     bf16  (pre-transposed, q-scale folded in)
    bqkv_ref,         # (1, 3E)     f32   (q-scale folded in)
    wo_ref,           # (E, E)      bf16  (pre-transposed)
    bo_ref,           # (1, E)      f32
    g1_ref, be1_ref,  # (1, E)      f32   layernorm1 weight / bias
    w1_ref,           # (E, F)      bf16  (pre-transposed)
    bb1_ref,          # (1, F)      f32
    w2_ref,           # (F, E)      bf16  (pre-transposed)
    bb2_ref,          # (1, E)      f32
    g2_ref, be2_ref,  # (1, E)      f32   layernorm2 weight / bias
    o_ref,            # (TB, S, E)  f32
    *,
    num_heads: int,
):
    TB, S, E = x_ref.shape
    H = num_heads
    D = E // H

    x = x_ref[...].reshape(TB * S, E)          # f32 residual stream
    xb = x.astype(jnp.bfloat16)

    # --- fused QKV projection: one (TB*S, E) x (E, 3E) matmul ---
    qkv = jnp.dot(xb, wqkv_ref[...], preferred_element_type=jnp.float32)
    qkv = qkv + bqkv_ref[...]                  # (TB*S, 3E) f32

    q = _split_heads(qkv[:, 0:E], TB, S, H, D)          # (TB*H, S, D) bf16 (scaled)
    k = _split_heads(qkv[:, E:2 * E], TB, S, H, D)
    v = _split_heads(qkv[:, 2 * E:3 * E], TB, S, H, D)

    # --- batched-head attention ---
    s = jnp.einsum('bqd,bkd->bqk', q, k,
                   preferred_element_type=jnp.float32)  # (TB*H, S, S) f32
    s = s - jnp.max(s, axis=-1, keepdims=True)
    p = jnp.exp(s)
    p = p * pl.reciprocal(jnp.sum(p, axis=-1, keepdims=True), approx=True)
    ctx = jnp.einsum('bqk,bkd->bqd', p.astype(jnp.bfloat16), v,
                     preferred_element_type=jnp.float32)  # (TB*H, S, D) f32
    attn = ctx.reshape(TB, H, S, D).transpose(0, 2, 1, 3).reshape(TB * S, E)

    attn = jnp.dot(attn.astype(jnp.bfloat16), wo_ref[...],
                   preferred_element_type=jnp.float32) + bo_ref[...]

    # --- residual + layernorm1 (dropout1 = identity in eval) ---
    out1 = _layernorm(x + attn, g1_ref[...], be1_ref[...])

    # --- feed-forward: Linear -> ReLU -> Linear ---
    hdn = jnp.dot(out1.astype(jnp.bfloat16), w1_ref[...],
                  preferred_element_type=jnp.float32) + bb1_ref[...]
    hdn = jnp.maximum(hdn, 0.0)
    ff = jnp.dot(hdn.astype(jnp.bfloat16), w2_ref[...],
                 preferred_element_type=jnp.float32) + bb2_ref[...]

    # --- residual + layernorm2 (dropout2 = identity in eval) ---
    o_ref[...] = _layernorm(out1 + ff, g2_ref[...], be2_ref[...]).reshape(TB, S, E)


def _pick_batch_block(B):
    # Amortize per-grid-step overhead but keep >= 2 parallel steps (megacore).
    for tb in (8, 4, 2, 1):
        if B % tb == 0 and B // tb >= 2:
            return tb
    return 1


def transformer_block(x, params, *, num_heads, batch_block=None):
    B, S, E = x.shape
    F = params["w1"].shape[0]
    D = E // num_heads
    scale = 1.0 / math.sqrt(D)

    TB = _pick_batch_block(B) if batch_block is None else batch_block
    assert B % TB == 0
    grid_b = B // TB

    # --- host-side weight prep: fold q-scale, pre-transpose, cast to bf16 ---
    row_scale = jnp.concatenate(
        [jnp.full((E,), scale, jnp.float32), jnp.ones((2 * E,), jnp.float32)])
    wqkv_t = (params["wqkv"] * row_scale[:, None]).T.astype(jnp.bfloat16)  # (E, 3E)
    bqkv = (params["bqkv"] * row_scale).reshape(1, 3 * E).astype(jnp.float32)
    wo_t = params["wo"].T.astype(jnp.bfloat16)                             # (E, E)
    w1_t = params["w1"].T.astype(jnp.bfloat16)                             # (E, F)
    w2_t = params["w2"].T.astype(jnp.bfloat16)                             # (F, E)

    # --- explicit VMEM budget (weights double-buffered by the pipeline) ---
    weight_bytes = 2 * (E * 3 * E + E * E + E * F + F * E)        # bf16
    small_bytes = 4 * (3 * E + E + F + 5 * E)                     # biases + LN params
    io_bytes = 4 * TB * S * E                                     # one x / out block
    act_bytes = 4 * (TB * S * (3 * E + 4 * E + 2 * F)
                     + 2 * TB * num_heads * S * S)
    est = 2 * (weight_bytes + 2 * io_bytes + small_bytes) + act_bytes
    vmem_limit = int(min(max(est * 3 // 2, 16 * 1024 * 1024), 64 * 1024 * 1024))
    # TODO(synk): at production E/F on v7x (64 MiB VMEM), single-buffer the
    # constant-index weight BlockSpecs (pipeline_mode) or tile FFN over K.

    def full2d(shape):
        return pl.BlockSpec(shape, lambda b: (0, 0))

    kernel = functools.partial(transformer_block_kernel, num_heads=num_heads)

    return pl.pallas_call(
        kernel,
        out_shape=jax.ShapeDtypeStruct((B, S, E), jnp.float32),
        grid_spec=pltpu.PrefetchScalarGridSpec(
            num_scalar_prefetch=0,
            grid=(grid_b,),
            in_specs=[
                pl.BlockSpec((TB, S, E), lambda b: (b, 0, 0)),   # x
                full2d((E, 3 * E)),                              # wqkv^T (scaled)
                full2d((1, 3 * E)),                              # bqkv (scaled)
                full2d((E, E)),                                  # wo^T
                full2d((1, E)),                                  # bo
                full2d((1, E)), full2d((1, E)),                  # ln1 gamma/beta
                full2d((E, F)),                                  # w1^T
                full2d((1, F)),                                  # bb1
                full2d((F, E)),                                  # w2^T
                full2d((1, E)),                                  # bb2
                full2d((1, E)), full2d((1, E)),                  # ln2 gamma/beta
            ],
            out_specs=pl.BlockSpec((TB, S, E), lambda b: (b, 0, 0)),
        ),
        compiler_params=pltpu.CompilerParams(
            dimension_semantics=("parallel",),
            vmem_limit_bytes=vmem_limit),
    )(
        x.astype(jnp.float32),
        wqkv_t, bqkv,
        wo_t, params["bo"].reshape(1, -1).astype(jnp.float32),
        params["g1"].reshape(1, -1), params["b1"].reshape(1, -1),
        w1_t, params["bb1"].reshape(1, -1).astype(jnp.float32),
        w2_t, params["bb2"].reshape(1, -1).astype(jnp.float32),
        params["g2"].reshape(1, -1), params["b2"].reshape(1, -1),
    )


def init_params(key, embed_dim, ff_dim):
    E, F = embed_dim, ff_dim
    ks = jax.random.split(key, 8)
    s_in = 1.0 / math.sqrt(E)
    s_ff = 1.0 / math.sqrt(F)
    return {
        "wqkv": jax.random.uniform(ks[0], (3 * E, E), jnp.float32, -s_in, s_in),
        "bqkv": jax.random.uniform(ks[1], (3 * E,), jnp.float32, -s_in, s_in),
        "wo":   jax.random.uniform(ks[2], (E, E), jnp.float32, -s_in, s_in),
        "bo":   jax.random.uniform(ks[3], (E,), jnp.float32, -s_in, s_in),
        "g1": jnp.ones((E,), jnp.float32),
        "b1": jnp.zeros((E,), jnp.float32),
        "w1":  jax.random.uniform(ks[4], (F, E), jnp.float32, -s_in, s_in),
        "bb1": jax.random.uniform(ks[5], (F,), jnp.float32, -s_in, s_in),
        "w2":  jax.random.uniform(ks[6], (E, F), jnp.float32, -s_ff, s_ff),
        "bb2": jax.random.uniform(ks[7], (E,), jnp.float32, -s_ff, s_ff),
        "g2": jnp.ones((E,), jnp.float32),
        "b2": jnp.zeros((E,), jnp.float32),
    }


def reference(x, params, num_heads):
    # Pure-JAX f32 reference with torch.nn.MultiheadAttention semantics.
    B, S, E = x.shape
    H = num_heads
    D = E // H
    qkv = jnp.einsum('bse,fe->bsf', x, params["wqkv"]) + params["bqkv"]
    q, k, v = qkv[..., :E], qkv[..., E:2 * E], qkv[..., 2 * E:]
    q = q.reshape(B, S, H, D).transpose(0, 2, 1, 3) / math.sqrt(D)
    k = k.reshape(B, S, H, D).transpose(0, 2, 1, 3)
    v = v.reshape(B, S, H, D).transpose(0, 2, 1, 3)
    p = jax.nn.softmax(jnp.einsum('bhqd,bhkd->bhqk', q, k), axis=-1)
    ctx = jnp.einsum('bhqk,bhkd->bhqd', p, v).transpose(0, 2, 1, 3).reshape(B, S, E)
    attn = jnp.einsum('bse,fe->bsf', ctx, params["wo"]) + params["bo"]

    def ln(y, g, b):
        m = y.mean(-1, keepdims=True)
        var = ((y - m) ** 2).mean(-1, keepdims=True)
        return (y - m) * jax.lax.rsqrt(var + 1e-5) * g + b

    out1 = ln(x + attn, params["g1"], params["b1"])
    h = jnp.maximum(jnp.einsum('bse,fe->bsf', out1, params["w1"]) + params["bb1"], 0.0)
    ff = jnp.einsum('bsf,ef->bse', h, params["w2"]) + params["bb2"]
    return ln(out1 + ff, params["g2"], params["b2"])


if __name__ == "__main__":
    # Small shapes consistent with the module's forward: (batch, seq, embed_dim)
    B, S, E, H, F = 2, 8, 32, 4, 64

    key = jax.random.PRNGKey(0)
    kx, kp = jax.random.split(key)
    x = jax.random.normal(kx, (B, S, E), dtype=jnp.float32)
    params = init_params(kp, E, F)

    out = transformer_block(x, params, num_heads=H)
    out = jax.block_until_ready(out)

    assert out.shape == (B, S, E) and out.dtype == jnp.float32
    assert bool(jnp.all(jnp.isfinite(out)))

    ref = reference(x, params, H)
    max_err = float(jnp.max(jnp.abs(out - ref)))
    assert max_err < 1e-1, f"max abs err vs f32 reference too large: {max_err}"

    print("KERNEL_OK")
</pallas_src>

<mosaic_0001>
module attributes {stable_mosaic.version = 11 : i64} {
  func.func @transformer_block_kernel(%arg0: i32, %arg1: memref<1x8x32xf32, #tpu.memory_space<vmem>>, %arg2: memref<32x96xbf16, #tpu.memory_space<vmem>>, %arg3: memref<1x96xf32, #tpu.memory_space<vmem>>, %arg4: memref<32x32xbf16, #tpu.memory_space<vmem>>, %arg5: memref<1x32xf32, #tpu.memory_space<vmem>>, %arg6: memref<1x32xf32, #tpu.memory_space<vmem>>, %arg7: memref<1x32xf32, #tpu.memory_space<vmem>>, %arg8: memref<32x64xbf16, #tpu.memory_space<vmem>>, %arg9: memref<1x64xf32, #tpu.memory_space<vmem>>, %arg10: memref<64x32xbf16, #tpu.memory_space<vmem>>, %arg11: memref<1x32xf32, #tpu.memory_space<vmem>>, %arg12: memref<1x32xf32, #tpu.memory_space<vmem>>, %arg13: memref<1x32xf32, #tpu.memory_space<vmem>>, %arg14: memref<1x8x32xf32, #tpu.memory_space<vmem>>) attributes {dimension_semantics = [#tpu.dimension_semantics<parallel>], iteration_bounds = array<i64: 2>, scalar_prefetch = 0 : i64, scratch_operands = 0 : i64, tpu.core_type = #tpu.core_type<tc>, window_params = [{transform_indices = @transform_0, window_bounds = array<i64: 1, 8, 32>}, {pipeline_mode = #tpu.pipeline_mode<synchronous>, transform_indices = @transform_1, window_bounds = array<i64: 32, 96>}, {pipeline_mode = #tpu.pipeline_mode<synchronous>, transform_indices = @transform_2, window_bounds = array<i64: 1, 96>}, {pipeline_mode = #tpu.pipeline_mode<synchronous>, transform_indices = @transform_3, window_bounds = array<i64: 32, 32>}, {pipeline_mode = #tpu.pipeline_mode<synchronous>, transform_indices = @transform_4, window_bounds = array<i64: 1, 32>}, {pipeline_mode = #tpu.pipeline_mode<synchronous>, transform_indices = @transform_5, window_bounds = array<i64: 1, 32>}, {pipeline_mode = #tpu.pipeline_mode<synchronous>, transform_indices = @transform_6, window_bounds = array<i64: 1, 32>}, {pipeline_mode = #tpu.pipeline_mode<synchronous>, transform_indices = @transform_7, window_bounds = array<i64: 32, 64>}, {pipeline_mode = #tpu.pipeline_mode<synchronous>, transform_indices = @transform_8, window_bounds = array<i64: 1, 64>}, {pipeline_mode = #tpu.pipeline_mode<synchronous>, transform_indices = @transform_9, window_bounds = array<i64: 64, 32>}, {pipeline_mode = #tpu.pipeline_mode<synchronous>, transform_indices = @transform_10, window_bounds = array<i64: 1, 32>}, {pipeline_mode = #tpu.pipeline_mode<synchronous>, transform_indices = @transform_11, window_bounds = array<i64: 1, 32>}, {pipeline_mode = #tpu.pipeline_mode<synchronous>, transform_indices = @transform_12, window_bounds = array<i64: 1, 32>}, {transform_indices = @transform_13, window_bounds = array<i64: 1, 8, 32>}]} {
    %c0 = arith.constant 0 : index
    %c0_0 = arith.constant 0 : index
    %c0_1 = arith.constant 0 : index
    %0 = vector.load %arg1[%c0, %c0_0, %c0_1] : memref<1x8x32xf32, #tpu.memory_space<vmem>>, vector<1x8x32xf32>
    %1 = vector.shape_cast %0 : vector<1x8x32xf32> to vector<8x32xf32>
    %2 = arith.truncf %1 : vector<8x32xf32> to vector<8x32xbf16>
    %c0_2 = arith.constant 0 : index
    %c0_3 = arith.constant 0 : index
    %3 = vector.load %arg2[%c0_2, %c0_3] : memref<32x96xbf16, #tpu.memory_space<vmem>>, vector<32x96xbf16>
    %cst = arith.constant dense<0.000000e+00> : vector<8x96xf32>
    %4 = tpu.matmul %2, %3, %cst {dimension_numbers = #tpu.dot_dimension_numbers<[1], [0], [0], [1], [0, 0, 1, 1], [], []>} : vector<8x32xbf16>, vector<32x96xbf16>, vector<8x96xf32> -> vector<8x96xf32>
    %c0_4 = arith.constant 0 : index
    %c0_5 = arith.constant 0 : index
    %5 = vector.load %arg3[%c0_4, %c0_5] : memref<1x96xf32, #tpu.memory_space<vmem>>, vector<1x96xf32>
    %6 = vector.broadcast %5 : vector<1x96xf32> to vector<8x96xf32>
    %7 = arith.addf %4, %6 : vector<8x96xf32>
    %8 = vector.extract_strided_slice %7 {offsets = [0, 0], sizes = [8, 32], strides = [1, 1]} : vector<8x96xf32> to vector<8x32xf32>
    %9 = vector.shape_cast %8 : vector<8x32xf32> to vector<1x8x4x8xf32>
    %10 = tpu.transpose %9, [0, 2, 1, 3] : vector<1x8x4x8xf32> -> vector<1x4x8x8xf32>
    %11 = vector.shape_cast %10 : vector<1x4x8x8xf32> to vector<4x8x8xf32>
    %12 = arith.truncf %11 : vector<4x8x8xf32> to vector<4x8x8xbf16>
    %13 = vector.extract_strided_slice %7 {offsets = [0, 32], sizes = [8, 32], strides = [1, 1]} : vector<8x96xf32> to vector<8x32xf32>
    %14 = vector.shape_cast %13 : vector<8x32xf32> to vector<1x8x4x8xf32>
    %15 = tpu.transpose %14, [0, 2, 1, 3] : vector<1x8x4x8xf32> -> vector<1x4x8x8xf32>
    %16 = vector.shape_cast %15 : vector<1x4x8x8xf32> to vector<4x8x8xf32>
    %17 = arith.truncf %16 : vector<4x8x8xf32> to vector<4x8x8xbf16>
    %18 = vector.extract_strided_slice %7 {offsets = [0, 64], sizes = [8, 32], strides = [1, 1]} : vector<8x96xf32> to vector<8x32xf32>
    %19 = vector.shape_cast %18 : vector<8x32xf32> to vector<1x8x4x8xf32>
    %20 = tpu.transpose %19, [0, 2, 1, 3] : vector<1x8x4x8xf32> -> vector<1x4x8x8xf32>
    %21 = vector.shape_cast %20 : vector<1x4x8x8xf32> to vector<4x8x8xf32>
    %22 = arith.truncf %21 : vector<4x8x8xf32> to vector<4x8x8xbf16>
    "tpu.trace_start"() <{level = 10 : i32, message = "bqd,bkd->bqk"}> : () -> ()
    %cst_6 = arith.constant dense<0.000000e+00> : vector<4x8x8xf32>
    %23 = tpu.matmul %12, %17, %cst_6 {dimension_numbers = #tpu.dot_dimension_numbers<[2], [2], [1], [1], [0, 0, 0, 1, 1, 1], [0], [0]>} : vector<4x8x8xbf16>, vector<4x8x8xbf16>, vector<4x8x8xf32> -> vector<4x8x8xf32>
    "tpu.trace_stop"() : () -> ()
    %cst_7 = arith.constant dense<0xFF800000> : vector<4x8xf32>
    %24 = vector.multi_reduction <maximumf>, %23, %cst_7 [2] : vector<4x8x8xf32> to vector<4x8xf32>
    %25 = vector.shape_cast %24 : vector<4x8xf32> to vector<4x8x1xf32>
    %26 = vector.broadcast %25 : vector<4x8x1xf32> to vector<4x8x8xf32>
    %27 = arith.subf %23, %26 : vector<4x8x8xf32>
    %28 = math.exp %27 : vector<4x8x8xf32>
    %cst_8 = arith.constant dense<0.000000e+00> : vector<4x8xf32>
    %29 = vector.multi_reduction <add>, %28, %cst_8 [2] : vector<4x8x8xf32> to vector<4x8xf32>
    %30 = vector.shape_cast %29 : vector<4x8xf32> to vector<4x8x1xf32>
    %31 = tpu.reciprocal %30 {approx = true} : vector<4x8x1xf32> -> vector<4x8x1xf32>
    %32 = vector.broadcast %31 : vector<4x8x1xf32> to vector<4x8x8xf32>
    %33 = arith.mulf %28, %32 : vector<4x8x8xf32>
    %34 = arith.truncf %33 : vector<4x8x8xf32> to vector<4x8x8xbf16>
    "tpu.trace_start"() <{level = 10 : i32, message = "bqk,bkd->bqd"}> : () -> ()
    %cst_9 = arith.constant dense<0.000000e+00> : vector<4x8x8xf32>
    %35 = tpu.matmul %34, %22, %cst_9 {dimension_numbers = #tpu.dot_dimension_numbers<[2], [1], [1], [2], [0, 0, 0, 1, 1, 2], [0], [0]>} : vector<4x8x8xbf16>, vector<4x8x8xbf16>, vector<4x8x8xf32> -> vector<4x8x8xf32>
    "tpu.trace_stop"() : () -> ()
    %36 = vector.shape_cast %35 : vector<4x8x8xf32> to vector<1x4x8x8xf32>
    %37 = tpu.transpose %36, [0, 2, 1, 3] : vector<1x4x8x8xf32> -> vector<1x8x4x8xf32>
    %38 = vector.shape_cast %37 : vector<1x8x4x8xf32> to vector<8x32xf32>
    %39 = arith.truncf %38 : vector<8x32xf32> to vector<8x32xbf16>
    %c0_10 = arith.constant 0 : index
    %c0_11 = arith.constant 0 : index
    %40 = vector.load %arg4[%c0_10, %c0_11] : memref<32x32xbf16, #tpu.memory_space<vmem>>, vector<32x32xbf16>
    %cst_12 = arith.constant dense<0.000000e+00> : vector<8x32xf32>
    %41 = tpu.matmul %39, %40, %cst_12 {dimension_numbers = #tpu.dot_dimension_numbers<[1], [0], [0], [1], [0, 0, 1, 1], [], []>} : vector<8x32xbf16>, vector<32x32xbf16>, vector<8x32xf32> -> vector<8x32xf32>
    %c0_13 = arith.constant 0 : index
    %c0_14 = arith.constant 0 : index
    %42 = vector.load %arg5[%c0_13, %c0_14] : memref<1x32xf32, #tpu.memory_space<vmem>>, vector<1x32xf32>
    %43 = vector.broadcast %42 : vector<1x32xf32> to vector<8x32xf32>
    %44 = arith.addf %41, %43 : vector<8x32xf32>
    %45 = arith.addf %1, %44 : vector<8x32xf32>
    %c0_15 = arith.constant 0 : index
    %c0_16 = arith.constant 0 : index
    %46 = vector.load %arg6[%c0_15, %c0_16] : memref<1x32xf32, #tpu.memory_space<vmem>>, vector<1x32xf32>
    %c0_17 = arith.constant 0 : index
    %c0_18 = arith.constant 0 : index
    %47 = vector.load %arg7[%c0_17, %c0_18] : memref<1x32xf32, #tpu.memory_space<vmem>>, vector<1x32xf32>
    %cst_19 = arith.constant dense<0.000000e+00> : vector<8xf32>
    %48 = vector.multi_reduction <add>, %45, %cst_19 [1] : vector<8x32xf32> to vector<8xf32>
    %49 = vector.shape_cast %48 : vector<8xf32> to vector<8x1xf32>
    %cst_20 = arith.constant 3.200000e+01 : f32
    %50 = vector.broadcast %cst_20 : f32 to vector<8x1xf32>
    %51 = arith.divf %49, %50 : vector<8x1xf32>
    %52 = vector.broadcast %51 : vector<8x1xf32> to vector<8x32xf32>
    %53 = arith.subf %45, %52 : vector<8x32xf32>
    %54 = arith.mulf %53, %53 : vector<8x32xf32>
    %cst_21 = arith.constant dense<0.000000e+00> : vector<8xf32>
    %55 = vector.multi_reduction <add>, %54, %cst_21 [1] : vector<8x32xf32> to vector<8xf32>
    %56 = vector.shape_cast %55 : vector<8xf32> to vector<8x1xf32>
    %cst_22 = arith.constant 3.200000e+01 : f32
    %57 = vector.broadcast %cst_22 : f32 to vector<8x1xf32>
    %58 = arith.divf %56, %57 : vector<8x1xf32>
    %cst_23 = arith.constant 9.99999974E-6 : f32
    %59 = vector.broadcast %cst_23 : f32 to vector<8x1xf32>
    %60 = arith.addf %58, %59 : vector<8x1xf32>
    %61 = math.rsqrt %60 : vector<8x1xf32>
    %62 = vector.broadcast %51 : vector<8x1xf32> to vector<8x32xf32>
    %63 = arith.subf %45, %62 : vector<8x32xf32>
    %64 = vector.broadcast %61 : vector<8x1xf32> to vector<8x32xf32>
    %65 = arith.mulf %63, %64 : vector<8x32xf32>
    %66 = vector.broadcast %46 : vector<1x32xf32> to vector<8x32xf32>
    %67 = arith.mulf %65, %66 : vector<8x32xf32>
    %68 = vector.broadcast %47 : vector<1x32xf32> to vector<8x32xf32>
    %69 = arith.addf %67, %68 : vector<8x32xf32>
    %70 = arith.truncf %69 : vector<8x32xf32> to vector<8x32xbf16>
    %c0_24 = arith.constant 0 : index
    %c0_25 = arith.constant 0 : index
    %71 = vector.load %arg8[%c0_24, %c0_25] : memref<32x64xbf16, #tpu.memory_space<vmem>>, vector<32x64xbf16>
    %cst_26 = arith.constant dense<0.000000e+00> : vector<8x64xf32>
    %72 = tpu.matmul %70, %71, %cst_26 {dimension_numbers = #tpu.dot_dimension_numbers<[1], [0], [0], [1], [0, 0, 1, 1], [], []>} : vector<8x32xbf16>, vector<32x64xbf16>, vector<8x64xf32> -> vector<8x64xf32>
    %c0_27 = arith.constant 0 : index
    %c0_28 = arith.constant 0 : index
    %73 = vector.load %arg9[%c0_27, %c0_28] : memref<1x64xf32, #tpu.memory_space<vmem>>, vector<1x64xf32>
    %74 = vector.broadcast %73 : vector<1x64xf32> to vector<8x64xf32>
    %75 = arith.addf %72, %74 : vector<8x64xf32>
    %cst_29 = arith.constant 0.000000e+00 : f32
    %76 = vector.broadcast %cst_29 : f32 to vector<8x64xf32>
    %77 = arith.maximumf %75, %76 : vector<8x64xf32>
    %78 = arith.truncf %77 : vector<8x64xf32> to vector<8x64xbf16>
    %c0_30 = arith.constant 0 : index
    %c0_31 = arith.constant 0 : index
    %79 = vector.load %arg10[%c0_30, %c0_31] : memref<64x32xbf16, #tpu.memory_space<vmem>>, vector<64x32xbf16>
    %cst_32 = arith.constant dense<0.000000e+00> : vector<8x32xf32>
    %80 = tpu.matmul %78, %79, %cst_32 {dimension_numbers = #tpu.dot_dimension_numbers<[1], [0], [0], [1], [0, 0, 1, 1], [], []>} : vector<8x64xbf16>, vector<64x32xbf16>, vector<8x32xf32> -> vector<8x32xf32>
    %c0_33 = arith.constant 0 : index
    %c0_34 = arith.constant 0 : index
    %81 = vector.load %arg11[%c0_33, %c0_34] : memref<1x32xf32, #tpu.memory_space<vmem>>, vector<1x32xf32>
    %82 = vector.broadcast %81 : vector<1x32xf32> to vector<8x32xf32>
    %83 = arith.addf %80, %82 : vector<8x32xf32>
    %84 = arith.addf %69, %83 : vector<8x32xf32>
    %c0_35 = arith.constant 0 : index
    %c0_36 = arith.constant 0 : index
    %85 = vector.load %arg12[%c0_35, %c0_36] : memref<1x32xf32, #tpu.memory_space<vmem>>, vector<1x32xf32>
    %c0_37 = arith.constant 0 : index
    %c0_38 = arith.constant 0 : index
    %86 = vector.load %arg13[%c0_37, %c0_38] : memref<1x32xf32, #tpu.memory_space<vmem>>, vector<1x32xf32>
    %cst_39 = arith.constant dense<0.000000e+00> : vector<8xf32>
    %87 = vector.multi_reduction <add>, %84, %cst_39 [1] : vector<8x32xf32> to vector<8xf32>
    %88 = vector.shape_cast %87 : vector<8xf32> to vector<8x1xf32>
    %cst_40 = arith.constant 3.200000e+01 : f32
    %89 = vector.broadcast %cst_40 : f32 to vector<8x1xf32>
    %90 = arith.divf %88, %89 : vector<8x1xf32>
    %91 = vector.broadcast %90 : vector<8x1xf32> to vector<8x32xf32>
    %92 = arith.subf %84, %91 : vector<8x32xf32>
    %93 = arith.mulf %92, %92 : vector<8x32xf32>
    %cst_41 = arith.constant dense<0.000000e+00> : vector<8xf32>
    %94 = vector.multi_reduction <add>, %93, %cst_41 [1] : vector<8x32xf32> to vector<8xf32>
    %95 = vector.shape_cast %94 : vector<8xf32> to vector<8x1xf32>
    %cst_42 = arith.constant 3.200000e+01 : f32
    %96 = vector.broadcast %cst_42 : f32 to vector<8x1xf32>
    %97 = arith.divf %95, %96 : vector<8x1xf32>
    %cst_43 = arith.constant 9.99999974E-6 : f32
    %98 = vector.broadcast %cst_43 : f32 to vector<8x1xf32>
    %99 = arith.addf %97, %98 : vector<8x1xf32>
    %100 = math.rsqrt %99 : vector<8x1xf32>
    %101 = vector.broadcast %90 : vector<8x1xf32> to vector<8x32xf32>
    %102 = arith.subf %84, %101 : vector<8x32xf32>
    %103 = vector.broadcast %100 : vector<8x1xf32> to vector<8x32xf32>
    %104 = arith.mulf %102, %103 : vector<8x32xf32>
    %105 = vector.broadcast %85 : vector<1x32xf32> to vector<8x32xf32>
    %106 = arith.mulf %104, %105 : vector<8x32xf32>
    %107 = vector.broadcast %86 : vector<1x32xf32> to vector<8x32xf32>
    %108 = arith.addf %106, %107 : vector<8x32xf32>
    %109 = vector.shape_cast %108 : vector<8x32xf32> to vector<1x8x32xf32>
    %c0_44 = arith.constant 0 : index
    %c0_45 = arith.constant 0 : index
    %c0_46 = arith.constant 0 : index
    %110 = vector.load %arg14[%c0_44, %c0_45, %c0_46] : memref<1x8x32xf32, #tpu.memory_space<vmem>>, vector<1x8x32xf32>
    tpu.vector_store %arg14[%c0_44, %c0_45, %c0_46], %109 {strides = array<i32>} : memref<1x8x32xf32, #tpu.memory_space<vmem>>, vector<1x8x32xf32>,
    return
  }
  func.func @transform_0(%arg0: i32) -> (i32, i32, i32) {
    %c0_i32 = arith.constant 0 : i32
    %c0_i32_0 = arith.constant 0 : i32
    %c0_i32_1 = arith.constant 0 : i32
    return %arg0, %c0_i32, %c0_i32_0 : i32, i32, i32
  }
  func.func @transform_1(%arg0: i32) -> (i32, i32) {
    %c0_i32 = arith.constant 0 : i32
    %c0_i32_0 = arith.constant 0 : i32
    %c0_i32_1 = arith.constant 0 : i32
    return %c0_i32, %c0_i32_0 : i32, i32
  }
  func.func @transform_2(%arg0: i32) -> (i32, i32) {
    %c0_i32 = arith.constant 0 : i32
    %c0_i32_0 = arith.constant 0 : i32
    %c0_i32_1 = arith.constant 0 : i32
    return %c0_i32, %c0_i32_0 : i32, i32
  }
  func.func @transform_3(%arg0: i32) -> (i32, i32) {
    %c0_i32 = arith.constant 0 : i32
    %c0_i32_0 = arith.constant 0 : i32
    %c0_i32_1 = arith.constant 0 : i32
    return %c0_i32, %c0_i32_0 : i32, i32
  }
  func.func @transform_4(%arg0: i32) -> (i32, i32) {
    %c0_i32 = arith.constant 0 : i32
    %c0_i32_0 = arith.constant 0 : i32
    %c0_i32_1 = arith.constant 0 : i32
    return %c0_i32, %c0_i32_0 : i32, i32
  }
  func.func @transform_5(%arg0: i32) -> (i32, i32) {
    %c0_i32 = arith.constant 0 : i32
    %c0_i32_0 = arith.constant 0 : i32
    %c0_i32_1 = arith.constant 0 : i32
    return %c0_i32, %c0_i32_0 : i32, i32
  }
  func.func @transform_6(%arg0: i32) -> (i32, i32) {
    %c0_i32 = arith.constant 0 : i32
    %c0_i32_0 = arith.constant 0 : i32
    %c0_i32_1 = arith.constant 0 : i32
    return %c0_i32, %c0_i32_0 : i32, i32
  }
  func.func @transform_7(%arg0: i32) -> (i32, i32) {
    %c0_i32 = arith.constant 0 : i32
    %c0_i32_0 = arith.constant 0 : i32
    %c0_i32_1 = arith.constant 0 : i32
    return %c0_i32, %c0_i32_0 : i32, i32
  }
  func.func @transform_8(%arg0: i32) -> (i32, i32) {
    %c0_i32 = arith.constant 0 : i32
    %c0_i32_0 = arith.constant 0 : i32
    %c0_i32_1 = arith.constant 0 : i32
    return %c0_i32, %c0_i32_0 : i32, i32
  }
  func.func @transform_9(%arg0: i32) -> (i32, i32) {
    %c0_i32 = arith.constant 0 : i32
    %c0_i32_0 = arith.constant 0 : i32
    %c0_i32_1 = arith.constant 0 : i32
    return %c0_i32, %c0_i32_0 : i32, i32
  }
  func.func @transform_10(%arg0: i32) -> (i32, i32) {
    %c0_i32 = arith.constant 0 : i32
    %c0_i32_0 = arith.constant 0 : i32
    %c0_i32_1 = arith.constant 0 : i32
    return %c0_i32, %c0_i32_0 : i32, i32
  }
  func.func @transform_11(%arg0: i32) -> (i32, i32) {
    %c0_i32 = arith.constant 0 : i32
    %c0_i32_0 = arith.constant 0 : i32
    %c0_i32_1 = arith.constant 0 : i32
    return %c0_i32, %c0_i32_0 : i32, i32
  }
  func.func @transform_12(%arg0: i32) -> (i32, i32) {
    %c0_i32 = arith.constant 0 : i32
    %c0_i32_0 = arith.constant 0 : i32
    %c0_i32_1 = arith.constant 0 : i32
    return %c0_i32, %c0_i32_0 : i32, i32
  }
  func.func @transform_13(%arg0: i32) -> (i32, i32, i32) {
    %c0_i32 = arith.constant 0 : i32
    %c0_i32_0 = arith.constant 0 : i32
    %c0_i32_1 = arith.constant 0 : i32
    return %arg0, %c0_i32, %c0_i32_0 : i32, i32, i32
  }
}

</mosaic_0001>

<llo_original>
// kernel: tpu_custom_call.1
$region0: #{tpu_custom_call.1}
  #allocation0 [shape = 'u32[]', space=smem, size = 0x4, offset = 0x4, fixed_abs, tag = 'smem constant byte address 0x4 - core index']
  #allocation1 [shape = 'u32[144,128]{1,0:T(1,128)}', space=vmem, size = 0x12000, scoped, tag = 'internal scratch']
  %s0 = inlined_call_operand.vmem [shape: f32[2,8,32], index: 0, kind: input, shape index: {}]
  %s1 = inlined_call_operand.vmem [shape: bf16[32,96], index: 1, kind: input, shape index: {}]
  %s2 = inlined_call_operand.hbm [shape: f32[1,96], index: 2, kind: input, shape index: {}]
  %s3 = inlined_call_operand.vmem [shape: bf16[32,32], index: 3, kind: input, shape index: {}]
  %s4 = inlined_call_operand.hbm [shape: f32[1,32], index: 4, kind: input, shape index: {}]
  %s5 = inlined_call_operand.hbm [shape: f32[1,32], index: 5, kind: input, shape index: {}]
  %s6 = inlined_call_operand.hbm [shape: f32[1,32], index: 6, kind: input, shape index: {}]
  %s7 = inlined_call_operand.hbm [shape: bf16[32,64], index: 7, kind: input, shape index: {}]
  %s8 = inlined_call_operand.hbm [shape: f32[1,64], index: 8, kind: input, shape index: {}]
  %s9 = inlined_call_operand.vmem [shape: bf16[64,32], index: 9, kind: input, shape index: {}]
  %s10 = inlined_call_operand.vmem [shape: f32[1,32], index: 10, kind: input, shape index: {}]
  %s11 = inlined_call_operand.vmem [shape: f32[1,32], index: 11, kind: input, shape index: {}]
  %s12 = inlined_call_operand.vmem [shape: f32[1,32], index: 12, kind: input, shape index: {}]
  %s13 = inlined_call_operand.hbm [shape: f32[2,8,32], index: 13, kind: output, shape index: {}]
  %s14 = sld [smem:[#allocation0]]
  $region109: #{tpu_custom_call.1} parent=0
    _
  %s16 = ssub.s32 1, %s14
  %s17 = scalar_select 0, %s16, %s14
  $region1: #{tpu_custom_call.1} parent=0
    #allocation2 [shape = 'u8[512]{0}', space=vmem, size = 0x400, scoped, tag = 'input window, operand 2, single buffered']
    #allocation3 [shape = 's32[2]{0}', space=sflag, size = 0x8, scoped, tag = 'scoped memory for tpu_custom_call.1']
    #allocation4 [shape = 's32[2]{0}', space=sflag, size = 0x8, scoped, tag = 'scoped memory for tpu_custom_call.1']
    #allocation5 [shape = 'u8[512]{0}', space=vmem, size = 0x400, scoped, tag = 'input window, operand 4, single buffered']
    #allocation6 [shape = 's32[1]{0}', space=sflag, size = 0x4, scoped, tag = 'scoped memory for tpu_custom_call.1']
    #allocation7 [shape = 'u8[512]{0}', space=vmem, size = 0x400, scoped, tag = 'input window, operand 5, single buffered']
    #allocation8 [shape = 'u8[512]{0}', space=vmem, size = 0x400, scoped, tag = 'input window, operand 6, single buffered']
    #allocation9 [shape = 's32[1]{0}', space=sflag, size = 0x4, scoped, tag = 'scoped memory for tpu_custom_call.1']
    #allocation10 [shape = 'u8[8192]{0}', space=vmem, size = 0x2000, scoped, tag = 'input window, operand 7, single buffered']
    #allocation11 [shape = 'u8[512]{0}', space=vmem, size = 0x400, scoped, tag = 'input window, operand 8, single buffered']
    #allocation12 [shape = 's32[1]{0}', space=sflag, size = 0x4, scoped, tag = 'scoped memory for tpu_custom_call.1']
    #allocation13 [shape = 'u8[8192]{0}', space=vmem, size = 0x2000, scoped, tag = 'output window, operand 0']
    %18 = vsyncpa [#allocation3], 0
    %19 = vsyncpa [#allocation6], 0
    %20 = vsyncpa [#allocation9], 0
    %21 = vsyncpa [#allocation12], 0
    %22 = vsyncpa [#allocation4], 0
    %s23 = scalar_lea.sflag [#allocation4], 1
    %24 = vsyncpa %s23, 0
    loop: start=0, step=1, limit=4
    $region2: #{tpu_custom_call.1} parent=1 // loop_pre_header
      _
    $region3: #{tpu_custom_call.1} parent=1 // loop_header
      %s26 = sphi 0, %s30
      %p27 = scmp.ge.s32.totalorder %s26, 4
      %s36 = sphi 0, %s38
      %s39 = sphi 0, %s36
      %s40 = sphi 0, %s39
      %s56 = sphi 0, %s40
      %s60 = sphi 0, %s60
      %s62 = sphi 0, %s60
      %s63 = sphi 0, %s62
      %s77 = sphi 0, %s63
      %s81 = sphi 0, %s81
      %s83 = sphi 0, %s81
      %s84 = sphi 0, %s83
      %s98 = sphi 0, %s84
      %s102 = sphi 0, %s102
      %s104 = sphi 0, %s102
      %s105 = sphi 0, %s104
      %s119 = sphi 0, %s105
      %s123 = sphi 0, %s123
      %s125 = sphi 0, %s123
      %s126 = sphi 0, %s125
      %s140 = sphi 0, %s126
      %s144 = sphi 0, %s144
      %s146 = sphi 0, %s144
      %s147 = sphi 0, %s146
      %s161 = sphi 0, %s147
      %s165 = sphi 0, %s165
      %s167 = sphi 0, %s165
      %s168 = sphi 0, %s167
      %s182 = sphi 0, %s168
      %s186 = sphi 0, %s186
      %s188 = sphi 0, %s186
      %s189 = sphi 0, %s188
      %s203 = sphi 0, %s189
      %s207 = sphi 0, %s207
      %s209 = sphi 0, %s207
      %s210 = sphi 0, %s209
      %s224 = sphi 0, %s210
      %s228 = sphi 0, %s228
      %s230 = sphi 0, %s228
      %s231 = sphi 0, %s230
      %s245 = sphi 0, %s231
      %s249 = sphi 0, %s249
      %s251 = sphi 0, %s249
      %s252 = sphi 0, %s251
      %s266 = sphi 0, %s252
      %s270 = sphi 0, %s270
      %s272 = sphi 0, %s270
      %s273 = sphi 0, %s272
      %s287 = sphi 0, %s273
      %s291 = sphi 0, %s291
      %s293 = sphi 0, %s291
      %s294 = sphi 0, %s293
      %s308 = sphi 0, %s294
      %s314 = sphi 0, %s316
      %s317 = sphi 0, %s314
      %s318 = sphi 0, %s317
      %s334 = sphi 0, %s318
    $region4: #{tpu_custom_call.1} parent=1 // loop_header_branch
      %29 = sbr.rel (%p27) target = $region8
    $region5: #{tpu_custom_call.1} parent=1 // loop_body
      %s31 = ssub.s32 %s26, 1
      %s32 = ssub.s32 %s26, 2
      %s33 = sadd.s32 %s26, 1
      %s34 = ssub.s32 %s26, %s33
      %p35 = scmp.eq.s32.totalorder %s34, 0
      %s37 = sadd.s32 %s36, 1
      %s38 = scalar_select %p35, %s36, %s37
      %p41 = pneg %p35
      %p42 = scmp.eq.s32.totalorder %s26, 1
      %p43 = por %p41, %p42
      %p44 = scmp.ne.s32.totalorder %s36, %s39
      %p45 = scmp.eq.s32.totalorder %s26, 0
      %p46 = por %p44, %p45
      %p47 = scmp.ne.s32.totalorder %s36, %s39
      %p48 = scmp.eq.s32.totalorder %s31, 1
      %p49 = por %p47, %p48
      %p50 = scmp.ne.s32.totalorder %s39, %s40
      %p51 = scmp.eq.s32.totalorder %s31, 0
      %p52 = por %p50, %p51
      %p53 = scmp.ne.s32.totalorder %s39, %s40
      %p54 = scmp.eq.s32.totalorder %s32, 1
      %p55 = por %p53, %p54
      %p57 = scmp.ne.s32.totalorder %s40, %s56
      %p58 = scmp.eq.s32.totalorder %s32, 0
      %p59 = por %p57, %p58
      %s61 = sadd.s32 %s60, 1
      %p64 = scmp.eq.s32.totalorder %s26, 1
      %p65 = scmp.ne.s32.totalorder %s60, %s62
      %p66 = scmp.eq.s32.totalorder %s26, 0
      %p67 = por %p65, %p66
      %p68 = scmp.ne.s32.totalorder %s60, %s62
      %p69 = scmp.eq.s32.totalorder %s31, 1
      %p70 = por %p68, %p69
      %p71 = scmp.ne.s32.totalorder %s62, %s63
      %p72 = scmp.eq.s32.totalorder %s31, 0
      %p73 = por %p71, %p72
      %p74 = scmp.ne.s32.totalorder %s62, %s63
      %p75 = scmp.eq.s32.totalorder %s32, 1
      %p76 = por %p74, %p75
      %p78 = scmp.ne.s32.totalorder %s63, %s77
      %p79 = scmp.eq.s32.totalorder %s32, 0
      %p80 = por %p78, %p79
      %s82 = sadd.s32 %s81, 1
      %p85 = scmp.eq.s32.totalorder %s26, 1
      %p86 = scmp.ne.s32.totalorder %s81, %s83
      %p87 = scmp.eq.s32.totalorder %s26, 0
      %p88 = por %p86, %p87
      %p89 = scmp.ne.s32.totalorder %s81, %s83
      %p90 = scmp.eq.s32.totalorder %s31, 1
      %p91 = por %p89, %p90
      %p92 = scmp.ne.s32.totalorder %s83, %s84
      %p93 = scmp.eq.s32.totalorder %s31, 0
      %p94 = por %p92, %p93
      %p95 = scmp.ne.s32.totalorder %s83, %s84
      %p96 = scmp.eq.s32.totalorder %s32, 1
      %p97 = por %p95, %p96
      %p99 = scmp.ne.s32.totalorder %s84, %s98
      %p100 = scmp.eq.s32.totalorder %s32, 0
      %p101 = por %p99, %p100
      %s103 = sadd.s32 %s102, 1
      %p106 = scmp.eq.s32.totalorder %s26, 1
      %p107 = scmp.ne.s32.totalorder %s102, %s104
      %p108 = scmp.eq.s32.totalorder %s26, 0
      %p109 = por %p107, %p108
      %p110 = scmp.ne.s32.totalorder %s102, %s104
      %p111 = scmp.eq.s32.totalorder %s31, 1
      %p112 = por %p110, %p111
      %p113 = scmp.ne.s32.totalorder %s104, %s105
      %p114 = scmp.eq.s32.totalorder %s31, 0
      %p115 = por %p113, %p114
      %p116 = scmp.ne.s32.totalorder %s104, %s105
      %p117 = scmp.eq.s32.totalorder %s32, 1
      %p118 = por %p116, %p117
      %p120 = scmp.ne.s32.totalorder %s105, %s119
      %p121 = scmp.eq.s32.totalorder %s32, 0
      %p122 = por %p120, %p121
      %s124 = sadd.s32 %s123, 1
      %p127 = scmp.eq.s32.totalorder %s26, 1
      %p128 = scmp.ne.s32.totalorder %s123, %s125
      %p129 = scmp.eq.s32.totalorder %s26, 0
      %p130 = por %p128, %p129
      %p131 = scmp.ne.s32.totalorder %s123, %s125
      %p132 = scmp.eq.s32.totalorder %s31, 1
      %p133 = por %p131, %p132
      %p134 = scmp.ne.s32.totalorder %s125, %s126
      %p135 = scmp.eq.s32.totalorder %s31, 0
      %p136 = por %p134, %p135
      %p137 = scmp.ne.s32.totalorder %s125, %s126
      %p138 = scmp.eq.s32.totalorder %s32, 1
      %p139 = por %p137, %p138
      %p141 = scmp.ne.s32.totalorder %s126, %s140
      %p142 = scmp.eq.s32.totalorder %s32, 0
      %p143 = por %p141, %p142
      %s145 = sadd.s32 %s144, 1
      %p148 = scmp.eq.s32.totalorder %s26, 1
      %p149 = scmp.ne.s32.totalorder %s144, %s146
      %p150 = scmp.eq.s32.totalorder %s26, 0
      %p151 = por %p149, %p150
      %p152 = scmp.ne.s32.totalorder %s144, %s146
      %p153 = scmp.eq.s32.totalorder %s31, 1
      %p154 = por %p152, %p153
      %p155 = scmp.ne.s32.totalorder %s146, %s147
      %p156 = scmp.eq.s32.totalorder %s31, 0
      %p157 = por %p155, %p156
      %p158 = scmp.ne.s32.totalorder %s146, %s147
      %p159 = scmp.eq.s32.totalorder %s32, 1
      %p160 = por %p158, %p159
      %p162 = scmp.ne.s32.totalorder %s147, %s161
      %p163 = scmp.eq.s32.totalorder %s32, 0
      %p164 = por %p162, %p163
      %s166 = sadd.s32 %s165, 1
      %p169 = scmp.eq.s32.totalorder %s26, 1
      %p170 = scmp.ne.s32.totalorder %s165, %s167
      %p171 = scmp.eq.s32.totalorder %s26, 0
      %p172 = por %p170, %p171
      %p173 = scmp.ne.s32.totalorder %s165, %s167
      %p174 = scmp.eq.s32.totalorder %s31, 1
      %p175 = por %p173, %p174
      %p176 = scmp.ne.s32.totalorder %s167, %s168
      %p177 = scmp.eq.s32.totalorder %s31, 0
      %p178 = por %p176, %p177
      %p179 = scmp.ne.s32.totalorder %s167, %s168
      %p180 = scmp.eq.s32.totalorder %s32, 1
      %p181 = por %p179, %p180
      %p183 = scmp.ne.s32.totalorder %s168, %s182
      %p184 = scmp.eq.s32.totalorder %s32, 0
      %p185 = por %p183, %p184
      %s187 = sadd.s32 %s186, 1
      %p190 = scmp.eq.s32.totalorder %s26, 1
      %p191 = scmp.ne.s32.totalorder %s186, %s188
      %p192 = scmp.eq.s32.totalorder %s26, 0
      %p193 = por %p191, %p192
      %p194 = scmp.ne.s32.totalorder %s186, %s188
      %p195 = scmp.eq.s32.totalorder %s31, 1
      %p196 = por %p194, %p195
      %p197 = scmp.ne.s32.totalorder %s188, %s189
      %p198 = scmp.eq.s32.totalorder %s31, 0
      %p199 = por %p197, %p198
      %p200 = scmp.ne.s32.totalorder %s188, %s189
      %p201 = scmp.eq.s32.totalorder %s32, 1
      %p202 = por %p200, %p201
      %p204 = scmp.ne.s32.totalorder %s189, %s203
      %p205 = scmp.eq.s32.totalorder %s32, 0
      %p206 = por %p204, %p205
      %s208 = sadd.s32 %s207, 1
      %p211 = scmp.eq.s32.totalorder %s26, 1
      %p212 = scmp.ne.s32.totalorder %s207, %s209
      %p213 = scmp.eq.s32.totalorder %s26, 0
      %p214 = por %p212, %p213
      %p215 = scmp.ne.s32.totalorder %s207, %s209
      %p216 = scmp.eq.s32.totalorder %s31, 1
      %p217 = por %p215, %p216
      %p218 = scmp.ne.s32.totalorder %s209, %s210
      %p219 = scmp.eq.s32.totalorder %s31, 0
      %p220 = por %p218, %p219
      %p221 = scmp.ne.s32.totalorder %s209, %s210
      %p222 = scmp.eq.s32.totalorder %s32, 1
      %p223 = por %p221, %p222
      %p225 = scmp.ne.s32.totalorder %s210, %s224
      %p226 = scmp.eq.s32.totalorder %s32, 0
      %p227 = por %p225, %p226
      %s229 = sadd.s32 %s228, 1
      %p232 = scmp.eq.s32.totalorder %s26, 1
      %p233 = scmp.ne.s32.totalorder %s228, %s230
      %p234 = scmp.eq.s32.totalorder %s26, 0
      %p235 = por %p233, %p234
      %p236 = scmp.ne.s32.totalorder %s228, %s230
      %p237 = scmp.eq.s32.totalorder %s31, 1
      %p238 = por %p236, %p237
      %p239 = scmp.ne.s32.totalorder %s230, %s231
      %p240 = scmp.eq.s32.totalorder %s31, 0
      %p241 = por %p239, %p240
      %p242 = scmp.ne.s32.totalorder %s230, %s231
      %p243 = scmp.eq.s32.totalorder %s32, 1
      %p244 = por %p242, %p243
      %p246 = scmp.ne.s32.totalorder %s231, %s245
      %p247 = scmp.eq.s32.totalorder %s32, 0
      %p248 = por %p246, %p247
      %s250 = sadd.s32 %s249, 1
      %p253 = scmp.eq.s32.totalorder %s26, 1
      %p254 = scmp.ne.s32.totalorder %s249, %s251
      %p255 = scmp.eq.s32.totalorder %s26, 0
      %p256 = por %p254, %p255
      %p257 = scmp.ne.s32.totalorder %s249, %s251
      %p258 = scmp.eq.s32.totalorder %s31, 1
      %p259 = por %p257, %p258
      %p260 = scmp.ne.s32.totalorder %s251, %s252
      %p261 = scmp.eq.s32.totalorder %s31, 0
      %p262 = por %p260, %p261
      %p263 = scmp.ne.s32.totalorder %s251, %s252
      %p264 = scmp.eq.s32.totalorder %s32, 1
      %p265 = por %p263, %p264
      %p267 = scmp.ne.s32.totalorder %s252, %s266
      %p268 = scmp.eq.s32.totalorder %s32, 0
      %p269 = por %p267, %p268
      %s271 = sadd.s32 %s270, 1
      %p274 = scmp.eq.s32.totalorder %s26, 1
      %p275 = scmp.ne.s32.totalorder %s270, %s272
      %p276 = scmp.eq.s32.totalorder %s26, 0
      %p277 = por %p275, %p276
      %p278 = scmp.ne.s32.totalorder %s270, %s272
      %p279 = scmp.eq.s32.totalorder %s31, 1
      %p280 = por %p278, %p279
      %p281 = scmp.ne.s32.totalorder %s272, %s273
      %p282 = scmp.eq.s32.totalorder %s31, 0
      %p283 = por %p281, %p282
      %p284 = scmp.ne.s32.totalorder %s272, %s273
      %p285 = scmp.eq.s32.totalorder %s32, 1
      %p286 = por %p284, %p285
      %p288 = scmp.ne.s32.totalorder %s273, %s287
      %p289 = scmp.eq.s32.totalorder %s32, 0
      %p290 = por %p288, %p289
      %s292 = sadd.s32 %s291, 1
      %p295 = scmp.eq.s32.totalorder %s26, 1
      %p296 = scmp.ne.s32.totalorder %s291, %s293
      %p297 = scmp.eq.s32.totalorder %s26, 0
      %p298 = por %p296, %p297
      %p299 = scmp.ne.s32.totalorder %s291, %s293
      %p300 = scmp.eq.s32.totalorder %s31, 1
      %p301 = por %p299, %p300
      %p302 = scmp.ne.s32.totalorder %s293, %s294
      %p303 = scmp.eq.s32.totalorder %s31, 0
      %p304 = por %p302, %p303
      %p305 = scmp.ne.s32.totalorder %s293, %s294
      %p306 = scmp.eq.s32.totalorder %s32, 1
      %p307 = por %p305, %p306
      %p309 = scmp.ne.s32.totalorder %s294, %s308
      %p310 = scmp.eq.s32.totalorder %s32, 0
      %p311 = por %p309, %p310
      %s312 = ssub.s32 %s26, %s33
      %p313 = scmp.eq.s32.totalorder %s312, 0
      %s315 = sadd.s32 %s314, 1
      %s316 = scalar_select %p313, %s314, %s315
      %p319 = pneg %p313
      %p320 = scmp.eq.s32.totalorder %s26, 1
      %p321 = por %p319, %p320
      %p322 = scmp.ne.s32.totalorder %s314, %s317
      %p323 = scmp.eq.s32.totalorder %s26, 0
      %p324 = por %p322, %p323
      %p325 = scmp.ne.s32.totalorder %s314, %s317
      %p326 = scmp.eq.s32.totalorder %s31, 1
      %p327 = por %p325, %p326
      %p328 = scmp.ne.s32.totalorder %s317, %s318
      %p329 = scmp.eq.s32.totalorder %s31, 0
      %p330 = por %p328, %p329
      %p331 = scmp.ne.s32.totalorder %s317, %s318
      %p332 = scmp.eq.s32.totalorder %s32, 1
      %p333 = por %p331, %p332
      %p335 = scmp.ne.s32.totalorder %s318, %s334
      %p336 = scmp.eq.s32.totalorder %s32, 0
      %p337 = por %p335, %p336
      %p338 = scmp.le.s32.totalorder 1, %s26
      %p339 = scmp.lt.s32.totalorder %s26, 3
      %p340 = pnand %p338, %p339
      %p341 = pneg %p340
      // Predicated region
      $region9: #{tpu_custom_call.1} parent=5 // pred_check
        _
      $region10: #{tpu_custom_call.1} parent=5 // pred_check_branch
        %343 = sbr.rel (%p340) target = $region12
      $region11: #{tpu_custom_call.1} parent=5 // pred_region
        %s344 = ssub.s32 %s26, 1
        // Predicated region
        $region13: #{tpu_custom_call.1} parent=11 // pred_check
          %p345 = pneg %p73
        $region14: #{tpu_custom_call.1} parent=11 // pred_check_branch
          %347 = sbr.rel (%p345) target = $region16
        $region15: #{tpu_custom_call.1} parent=11 // pred_region
          _
        $region16: #{tpu_custom_call.1} parent=11 // pred_fallthru
          _
        // Predicated region
        $region17: #{tpu_custom_call.1} parent=11 // pred_check
          %p348 = pneg %p94
        $region18: #{tpu_custom_call.1} parent=11 // pred_check_branch
          %350 = sbr.rel (%p348) target = $region20
        $region19: #{tpu_custom_call.1} parent=11 // pred_region
          %s352 = ssub.s32 16, 16
          %353 = vsyncadd [#allocation3], %s352
          %s355 = sshll.u32 [#allocation2], 4
          %s356 = int_to_ptr.vmem [resolvable:$true] %s355
          %358 = dma.hbm_to_vmem [thread:$0]  %s2, 16, %s356, [#allocation3]
        $region20: #{tpu_custom_call.1} parent=11 // pred_fallthru
          _
        // Predicated region
        $region21: #{tpu_custom_call.1} parent=11 // pred_check
          %p359 = pneg %p115
        $region22: #{tpu_custom_call.1} parent=11 // pred_check_branch
          %361 = sbr.rel (%p359) target = $region24
        $region23: #{tpu_custom_call.1} parent=11 // pred_region
          _
        $region24: #{tpu_custom_call.1} parent=11 // pred_fallthru
          _
        // Predicated region
        $region25: #{tpu_custom_call.1} parent=11 // pred_check
          %p362 = pneg %p136
        $region26: #{tpu_custom_call.1} parent=11 // pred_check_branch
          %364 = sbr.rel (%p362) target = $region28
        $region27: #{tpu_custom_call.1} parent=11 // pred_region
          %s366 = ssub.s32 16, 16
          %367 = vsyncadd [#allocation6], %s366
          %s369 = sshll.u32 [#allocation5], 4
          %s370 = int_to_ptr.vmem [resolvable:$true] %s369
          %372 = dma.hbm_to_vmem [thread:$0]  %s4, 16, %s370, [#allocation6]
        $region28: #{tpu_custom_call.1} parent=11 // pred_fallthru
          _
        // Predicated region
        $region29: #{tpu_custom_call.1} parent=11 // pred_check
          %p373 = pneg %p157
        $region30: #{tpu_custom_call.1} parent=11 // pred_check_branch
          %375 = sbr.rel (%p373) target = $region32
        $region31: #{tpu_custom_call.1} parent=11 // pred_region
          %s377 = ssub.s32 16, 16
          %378 = vsyncadd [#allocation6], %s377
          %s380 = sshll.u32 [#allocation7], 4
          %s381 = int_to_ptr.vmem [resolvable:$true] %s380
          %383 = dma.hbm_to_vmem [thread:$0]  %s5, 16, %s381, [#allocation6]
        $region32: #{tpu_custom_call.1} parent=11 // pred_fallthru
          _
        // Predicated region
        $region33: #{tpu_custom_call.1} parent=11 // pred_check
          %p384 = pneg %p178
        $region34: #{tpu_custom_call.1} parent=11 // pred_check_branch
          %386 = sbr.rel (%p384) target = $region36
        $region35: #{tpu_custom_call.1} parent=11 // pred_region
          %s388 = ssub.s32 16, 16
          %389 = vsyncadd [#allocation9], %s388
          %s391 = sshll.u32 [#allocation8], 4
          %s392 = int_to_ptr.vmem [resolvable:$true] %s391
          %394 = dma.hbm_to_vmem [thread:$0]  %s6, 16, %s392, [#allocation9]
        $region36: #{tpu_custom_call.1} parent=11 // pred_fallthru
          _
        // Predicated region
        $region37: #{tpu_custom_call.1} parent=11 // pred_check
          %p395 = pneg %p199
        $region38: #{tpu_custom_call.1} parent=11 // pred_check_branch
          %397 = sbr.rel (%p395) target = $region40
        $region39: #{tpu_custom_call.1} parent=11 // pred_region
          %s399 = ssub.s32 256, 256
          %400 = vsyncadd [#allocation9], %s399
          %s401 = sshll.u32 [#allocation10], 4
          %s402 = int_to_ptr.vmem [resolvable:$true] %s401
          %407 = dma.hbm_to_vmem [thread:$0]  %s7, 256, %s402, [#allocation9], 64, 64, 4
        $region40: #{tpu_custom_call.1} parent=11 // pred_fallthru
          _
        // Predicated region
        $region41: #{tpu_custom_call.1} parent=11 // pred_check
          %p408 = pneg %p220
        $region42: #{tpu_custom_call.1} parent=11 // pred_check_branch
          %410 = sbr.rel (%p408) target = $region44
        $region43: #{tpu_custom_call.1} parent=11 // pred_region
          %s412 = ssub.s32 16, 16
          %413 = vsyncadd [#allocation12], %s412
          %s415 = sshll.u32 [#allocation11], 4
          %s416 = int_to_ptr.vmem [resolvable:$true] %s415
          %418 = dma.hbm_to_vmem [thread:$0]  %s8, 16, %s416, [#allocation12]
        $region44: #{tpu_custom_call.1} parent=11 // pred_fallthru
          _
        // Predicated region
        $region45: #{tpu_custom_call.1} parent=11 // pred_check
          %p419 = pneg %p241
        $region46: #{tpu_custom_call.1} parent=11 // pred_check_branch
          %421 = sbr.rel (%p419) target = $region48
        $region47: #{tpu_custom_call.1} parent=11 // pred_region
          _
        $region48: #{tpu_custom_call.1} parent=11 // pred_fallthru
          _
        // Predicated region
        $region49: #{tpu_custom_call.1} parent=11 // pred_check
          %p422 = pneg %p262
        $region50: #{tpu_custom_call.1} parent=11 // pred_check_branch
          %424 = sbr.rel (%p422) target = $region52
        $region51: #{tpu_custom_call.1} parent=11 // pred_region
          _
        $region52: #{tpu_custom_call.1} parent=11 // pred_fallthru
          _
        // Predicated region
        $region53: #{tpu_custom_call.1} parent=11 // pred_check
          %p425 = pneg %p283
        $region54: #{tpu_custom_call.1} parent=11 // pred_check_branch
          %427 = sbr.rel (%p425) target = $region56
        $region55: #{tpu_custom_call.1} parent=11 // pred_region
          _
        $region56: #{tpu_custom_call.1} parent=11 // pred_fallthru
          _
        // Predicated region
        $region57: #{tpu_custom_call.1} parent=11 // pred_check
          %p428 = pneg %p304
        $region58: #{tpu_custom_call.1} parent=11 // pred_check_branch
          %430 = sbr.rel (%p428) target = $region60
        $region59: #{tpu_custom_call.1} parent=11 // pred_region
          _
        $region60: #{tpu_custom_call.1} parent=11 // pred_fallthru
          _
      $region12: #{tpu_custom_call.1} parent=5 // pred_fallthru
        _
      %p431 = scmp.lt.s32.totalorder %s26, 2
      // Predicated region
      $region61: #{tpu_custom_call.1} parent=5 // pred_check
        %p432 = pneg %p431
      $region62: #{tpu_custom_call.1} parent=5 // pred_check_branch
        %434 = sbr.rel (%p432) target = $region64
      $region63: #{tpu_custom_call.1} parent=5 // pred_region
        // Predicated region
        $region65: #{tpu_custom_call.1} parent=63 // pred_check
          %p435 = pneg %p46
        $region66: #{tpu_custom_call.1} parent=63 // pred_check_branch
          %437 = sbr.rel (%p435) target = $region68
        $region67: #{tpu_custom_call.1} parent=63 // pred_region
          %p438 = scmp.lt.s32.totalorder %s26, 1
          %s439 = scalar_select %p438, %s26, 1
          %s440 = smul.addr %s439, 8
          %s441 = scalar_lea.vmem %s0, %s440
        $region68: #{tpu_custom_call.1} parent=63 // pred_fallthru
          _
      $region64: #{tpu_custom_call.1} parent=5 // pred_fallthru
        _
      %p442 = scmp.le.s32.totalorder 1, %s26
      %p443 = scmp.lt.s32.totalorder %s26, 3
      %p444 = pnand %p442, %p443
      %p445 = pneg %p444
      // Predicated region
      $region69: #{tpu_custom_call.1} parent=5 // pred_check
        _
      $region70: #{tpu_custom_call.1} parent=5 // pred_check_branch
        %447 = sbr.rel (%p444) target = $region72
      $region71: #{tpu_custom_call.1} parent=5 // pred_region
        %s448 = ssub.s32 %s26, 1
        // Predicated region
        $region73: #{tpu_custom_call.1} parent=71 // pred_check
          %p449 = pneg %p94
        $region74: #{tpu_custom_call.1} parent=71 // pred_check_branch
          %451 = sbr.rel (%p449) target = $region76
        $region75: #{tpu_custom_call.1} parent=71 // pred_region
          %452 = dma.done [#allocation3], 16
        $region76: #{tpu_custom_call.1} parent=71 // pred_fallthru
          _
        // Predicated region
        $region77: #{tpu_custom_call.1} parent=71 // pred_check
          %p453 = pneg %p136
        $region78: #{tpu_custom_call.1} parent=71 // pred_check_branch
          %455 = sbr.rel (%p453) target = $region80
        $region79: #{tpu_custom_call.1} parent=71 // pred_region
          %456 = dma.done [#allocation6], 16
        $region80: #{tpu_custom_call.1} parent=71 // pred_fallthru
          _
        // Predicated region
        $region81: #{tpu_custom_call.1} parent=71 // pred_check
          %p457 = pneg %p157
        $region82: #{tpu_custom_call.1} parent=71 // pred_check_branch
          %459 = sbr.rel (%p457) target = $region84
        $region83: #{tpu_custom_call.1} parent=71 // pred_region
          %460 = dma.done [#allocation6], 16
        $region84: #{tpu_custom_call.1} parent=71 // pred_fallthru
          _
        // Predicated region
        $region85: #{tpu_custom_call.1} parent=71 // pred_check
          %p461 = pneg %p178
        $region86: #{tpu_custom_call.1} parent=71 // pred_check_branch
          %463 = sbr.rel (%p461) target = $region88
        $region87: #{tpu_custom_call.1} parent=71 // pred_region
          %464 = dma.done [#allocation9], 16
        $region88: #{tpu_custom_call.1} parent=71 // pred_fallthru
          _
        // Predicated region
        $region89: #{tpu_custom_call.1} parent=71 // pred_check
          %p465 = pneg %p199
        $region90: #{tpu_custom_call.1} parent=71 // pred_check_branch
          %467 = sbr.rel (%p465) target = $region92
        $region91: #{tpu_custom_call.1} parent=71 // pred_region
          %468 = dma.done [#allocation9], 256
        $region92: #{tpu_custom_call.1} parent=71 // pred_fallthru
          _
        // Predicated region
        $region93: #{tpu_custom_call.1} parent=71 // pred_check
          %p469 = pneg %p220
        $region94: #{tpu_custom_call.1} parent=71 // pred_check_branch
          %471 = sbr.rel (%p469) target = $region96
        $region95: #{tpu_custom_call.1} parent=71 // pred_region
          %472 = dma.done [#allocation12], 16
        $region96: #{tpu_custom_call.1} parent=71 // pred_fallthru
          _
        %p473 = scmp.lt.s32.totalorder %s31, 1
        %s474 = scalar_select %p473, %s31, 1
        %s475 = smul.addr %s474, 8
        %s476 = scalar_lea.vmem %s0, %s475
        %p477 = pneg %p52
        %p478 = pneg %p49
        %p479 = pneg %p73
        %p480 = pneg %p70
        %p481 = pneg %p94
        %p482 = pneg %p91
        %p483 = pneg %p115
        %p484 = pneg %p112
        %p485 = pneg %p136
        %p486 = pneg %p133
        %p487 = pneg %p157
        %p488 = pneg %p154
        %p489 = pneg %p178
        %p490 = pneg %p175
        %p491 = pneg %p199
        %p492 = pneg %p196
        %p493 = pneg %p220
        %p494 = pneg %p217
        %p495 = pneg %p241
        %p496 = pneg %p238
        %p497 = pneg %p262
        %p498 = pneg %p259
        %p499 = pneg %p283
        %p500 = pneg %p280
        %p501 = pneg %p304
        %p502 = pneg %p301
        %p503 = pneg %p330
        %p504 = pneg %p327
        %s505 = sand.u32 %s317, 1
        %s506 = scalar_lea.sflag [#allocation4], %s505
        %s507 = sand.u32 %s317, 1
        %s508 = smul.addr %s507, 8
        %s509 = scalar_lea.vmem [#allocation13], %s508
        %p510 = scmp.lt.s32.totalorder %s31, 1
        %s511 = scalar_select %p510, %s31, 1
        %s512 = smul.addr %s511, 8
        %s513 = scalar_lea.vmem %s0, %s512
        %v515 = vld [vmem:[%s513] sm:$0xff]
        %v516 = vpack.c.bf16 %v515, %v515
        %v517 = vld [vmem:[%s1] sm:$0xf]
        %v518 = vld [vmem:[%s1 + $0x4] sm:$0xf]
        %v519 = vld [vmem:[%s1 + $0x8] sm:$0xf]
        %v520 = vld [vmem:[%s1 + $0xc] sm:$0xf]
        %v521 = vld [vmem:[#allocation2] sm:$0x1]
        %v523 = vlaneseq
        %v524 = vshrl.u32 %v523, 7
        %v525 = vsub.s32 0, %v524
        %v526 = vrot.slane %v521, %v525
        %v532 = vunpack.c.l.b16 %v517
        %v533 = vunpack.c.l.b16 %v518
        %v534 = vunpack.c.l.b16 %v519
        %v535 = vunpack.c.l.b16 %v520
        %v536 = vpack.c.b16 %v533, %v532
        %v537 = vpack.c.b16 %v535, %v534
        %vm540 = vcmask 261120
        %v542 = vsel %vm540, %v516, 0
        %544 = vmatprep.subr.bf16.mxu0 0
        %545 = vmatpush1.bf16.msra.mxu0 0
        %546 = vmatprep.subr.bf16.mxu0 0
        %547 = vmatpush1.bf16.msra.mxu0 0
        %548 = vmatprep.subr.bf16.mxu0 0
        %549 = vmatpush1.bf16.msra.mxu0 0
        %550 = vmatprep.subr.bf16.mxu0 0
        %551 = vmatpush1.bf16.msra.mxu0 0
        %552 = vmatprep.subr.bf16.mxu0 0
        %553 = vmatpush1.bf16.msra.mxu0 0
        %554 = vmatprep.subr.bf16.mxu0 0
        %555 = vmatpush1.bf16.msra.mxu0 0
        %556 = vmatprep.subr.bf16.mxu0 0
        %557 = vmatpush1.bf16.msra.mxu0 %v537
        %558 = vmatprep.subr.bf16.mxu0 0
        %559 = vmatpush1.bf16.msra.mxu0 %v536
        %560 = vmatprep.subr.bf16.mxu0 0
        %561 = vmatpush2.bf16.msra.mxu0 0
        %562 = vmatprep.subr.bf16.mxu0 0
        %563 = vmatpush2.bf16.msra.mxu0 0
        %564 = vmatprep.subr.bf16.mxu0 0
        %565 = vmatpush2.bf16.msra.mxu0 0
        %566 = vmatprep.subr.bf16.mxu0 0
        %567 = vmatpush2.bf16.msra.mxu0 0
        %568 = vmatprep.subr.bf16.mxu0 0
        %569 = vmatpush2.bf16.msra.mxu0 0
        %570 = vmatprep.subr.bf16.mxu0 0
        %571 = vmatpush2.bf16.msra.mxu0 0
        %572 = vmatprep.subr.bf16.mxu0 0
        %573 = vmatpush2.bf16.msra.mxu0 0
        %574 = vmatprep.subr.bf16.mxu0 0
        %575 = vmatpush2.bf16.msra.mxu0 0
        %576 = vmatprep.mubr.bf16.mxu0 0
        %577 = vmatmul.mubr.bf16.gmra.mxu0 %v542
        %v578 = vpop.f32.mrf.mxu0
        %v579 = vadd.f32 %v526, %v578
        %v580 = vpop.f32.mrf.mxu0
        %v581 = vpop.f32.mrf.mxu0
        %v582 = vpop.f32.mrf.mxu0
        %583 = vdwg.mxu0
        %585 = vrot.lane.b32.xlu0 %v579, 120
        %v586 = vpop.permute.xlu0 %585
        %588 = vrot.lane.b32.xlu0 %v579, 112
        %v589 = vpop.permute.xlu0 %588
        %591 = vrot.lane.b32.xlu0 %v579, 104
        %v592 = vpop.permute.xlu0 %591
        %v594 = vcombine.low %v579, %v589
        %v595 = vcombine.high %v579, %v589
        %v597 = vunpack.c.l.s4 1983009808
        %v598 = vunpack.c.0.s8 %v597
        %v599 = vlaneseq
        %v600 = vshrl.u32 %v599, 7
        %v601 = vsub.s32 %v598, %v600
        %v602 = vrot.slane %v594, %v601
        %v604 = vunpack.c.l.s4 1983009808
        %v605 = vunpack.c.0.s8 %v604
        %v606 = vlaneseq
        %v607 = vshrl.u32 %v606, 7
        %v608 = vsub.s32 %v605, %v607
        %v609 = vrot.slane %v595, %v608
        %v610 = vcombine.low %v586, %v592
        %v611 = vcombine.high %v586, %v592
        %v613 = vunpack.c.l.s4 1983009808
        %v614 = vunpack.c.0.s8 %v613
        %v615 = vlaneseq
        %v616 = vshrl.u32 %v615, 7
        %v617 = vsub.s32 %v614, %v616
        %v618 = vrot.slane %v610, %v617
        %v620 = vunpack.c.l.s4 1983009808
        %v621 = vunpack.c.0.s8 %v620
        %v622 = vlaneseq
        %v623 = vshrl.u32 %v622, 7
        %v624 = vsub.s32 %v621, %v623
        %v625 = vrot.slane %v611, %v624
        %v626 = vcombine.low %v602, %v618
        %v627 = vcombine.high %v602, %v618
        %v629 = vunpack.c.l.s4 1934713408
        %v630 = vunpack.c.0.s8 %v629
        %v631 = vlaneseq
        %v632 = vshrl.u32 %v631, 7
        %v633 = vsub.s32 %v630, %v632
        %v634 = vrot.slane %v626, %v633
        %v636 = vunpack.c.l.s4 1934713408
        %v637 = vunpack.c.0.s8 %v636
        %v638 = vlaneseq
        %v639 = vshrl.u32 %v638, 7
        %v640 = vsub.s32 %v637, %v639
        %v641 = vrot.slane %v627, %v640
        %v642 = vcombine.low %v609, %v625
        %v643 = vcombine.high %v609, %v625
        %v645 = vunpack.c.l.s4 1934713408
        %v646 = vunpack.c.0.s8 %v645
        %v647 = vlaneseq
        %v648 = vshrl.u32 %v647, 7
        %v649 = vsub.s32 %v646, %v648
        %v650 = vrot.slane %v642, %v649
        %v652 = vunpack.c.l.s4 1934713408
        %v653 = vunpack.c.0.s8 %v652
        %v654 = vlaneseq
        %v655 = vshrl.u32 %v654, 7
        %v656 = vsub.s32 %v653, %v655
        %v657 = vrot.slane %v643, %v656
        %v658 = vcombine.high %v634, 0.0
        %v659 = vcombine.high %v641, 0.0
        %v660 = vcombine.high %v650, 0.0
        %v661 = vcombine.high %v657, 0.0
        %v662 = vcombine.low %v634, %v641
        %v664 = vunpack.c.l.s4 1983009808
        %v665 = vunpack.c.0.s8 %v664
        %v666 = vlaneseq
        %v667 = vshrl.u32 %v666, 7
        %v668 = vsub.s32 %v665, %v667
        %v669 = vrot.slane %v662, %v668
        %v670 = vcombine.low %v658, %v659
        %v672 = vunpack.c.l.s4 1983009808
        %v673 = vunpack.c.0.s8 %v672
        %v674 = vlaneseq
        %v675 = vshrl.u32 %v674, 7
        %v676 = vsub.s32 %v673, %v675
        %v677 = vrot.slane %v670, %v676
        %v678 = vcombine.low %v650, %v657
        %v680 = vunpack.c.l.s4 1983009808
        %v681 = vunpack.c.0.s8 %v680
        %v682 = vlaneseq
        %v683 = vshrl.u32 %v682, 7
        %v684 = vsub.s32 %v681, %v683
        %v685 = vrot.slane %v678, %v684
        %v686 = vcombine.low %v660, %v661
        %v688 = vunpack.c.l.s4 1983009808
        %v689 = vunpack.c.0.s8 %v688
        %v690 = vlaneseq
        %v691 = vshrl.u32 %v690, 7
        %v692 = vsub.s32 %v689, %v691
        %v693 = vrot.slane %v686, %v692
        %v694 = vcombine.low %v669, %v677
        %v695 = vcombine.high %v669, %v677
        %v697 = vunpack.c.l.s4 1934713408
        %v698 = vunpack.c.0.s8 %v697
        %v699 = vlaneseq
        %v700 = vshrl.u32 %v699, 7
        %v701 = vsub.s32 %v698, %v700
        %v702 = vrot.slane %v694, %v701
        %v704 = vunpack.c.l.s4 1934713408
        %v705 = vunpack.c.0.s8 %v704
        %v706 = vlaneseq
        %v707 = vshrl.u32 %v706, 7
        %v708 = vsub.s32 %v705, %v707
        %v709 = vrot.slane %v695, %v708
        %v710 = vcombine.low %v685, %v693
        %v711 = vcombine.high %v685, %v693
        %v713 = vunpack.c.l.s4 1934713408
        %v714 = vunpack.c.0.s8 %v713
        %v715 = vlaneseq
        %v716 = vshrl.u32 %v715, 7
        %v717 = vsub.s32 %v714, %v716
        %v718 = vrot.slane %v710, %v717
        %v720 = vunpack.c.l.s4 1934713408
        %v721 = vunpack.c.0.s8 %v720
        %v722 = vlaneseq
        %v723 = vshrl.u32 %v722, 7
        %v724 = vsub.s32 %v721, %v723
        %v725 = vrot.slane %v711, %v724
        %v726 = vcombine.low %v702, %v718
        %v727 = vcombine.high %v702, %v718
        %v728 = vcombine.low %v709, %v725
        %v729 = vcombine.high %v709, %v725
        %v730 = vpack.c.bf16 %v726, %v726
        %v731 = vpack.c.bf16 %v727, %v727
        %v732 = vpack.c.bf16 %v728, %v728
        %v733 = vpack.c.bf16 %v729, %v729
        %734 = vrot.lane.b32.xlu0 %v579, 96
        %v735 = vpop.permute.xlu0 %734
        %736 = vrot.lane.b32.xlu0 %v586, 96
        %v737 = vpop.permute.xlu0 %736
        %738 = vrot.lane.b32.xlu0 %v589, 96
        %v739 = vpop.permute.xlu0 %738
        %740 = vrot.lane.b32.xlu0 %v592, 96
        %v741 = vpop.permute.xlu0 %740
        %v746 = vcombine.low %v735, %v739
        %v747 = vcombine.high %v735, %v739
        %v749 = vunpack.c.l.s4 1983009808
        %v750 = vunpack.c.0.s8 %v749
        %v751 = vlaneseq
        %v752 = vshrl.u32 %v751, 7
        %v753 = vsub.s32 %v750, %v752
        %v754 = vrot.slane %v746, %v753
        %v756 = vunpack.c.l.s4 1983009808
        %v757 = vunpack.c.0.s8 %v756
        %v758 = vlaneseq
        %v759 = vshrl.u32 %v758, 7
        %v760 = vsub.s32 %v757, %v759
        %v761 = vrot.slane %v747, %v760
        %v762 = vcombine.low %v737, %v741
        %v763 = vcombine.high %v737, %v741
        %v765 = vunpack.c.l.s4 1983009808
        %v766 = vunpack.c.0.s8 %v765
        %v767 = vlaneseq
        %v768 = vshrl.u32 %v767, 7
        %v769 = vsub.s32 %v766, %v768
        %v770 = vrot.slane %v762, %v769
        %v772 = vunpack.c.l.s4 1983009808
        %v773 = vunpack.c.0.s8 %v772
        %v774 = vlaneseq
        %v775 = vshrl.u32 %v774, 7
        %v776 = vsub.s32 %v773, %v775
        %v777 = vrot.slane %v763, %v776
        %v778 = vcombine.low %v754, %v770
        %v779 = vcombine.high %v754, %v770
        %v781 = vunpack.c.l.s4 1934713408
        %v782 = vunpack.c.0.s8 %v781
        %v783 = vlaneseq
        %v784 = vshrl.u32 %v783, 7
        %v785 = vsub.s32 %v782, %v784
        %v786 = vrot.slane %v778, %v785
        %v788 = vunpack.c.l.s4 1934713408
        %v789 = vunpack.c.0.s8 %v788
        %v790 = vlaneseq
        %v791 = vshrl.u32 %v790, 7
        %v792 = vsub.s32 %v789, %v791
        %v793 = vrot.slane %v779, %v792
        %v794 = vcombine.low %v761, %v777
        %v795 = vcombine.high %v761, %v777
        %v797 = vunpack.c.l.s4 1934713408
        %v798 = vunpack.c.0.s8 %v797
        %v799 = vlaneseq
        %v800 = vshrl.u32 %v799, 7
        %v801 = vsub.s32 %v798, %v800
        %v802 = vrot.slane %v794, %v801
        %v804 = vunpack.c.l.s4 1934713408
        %v805 = vunpack.c.0.s8 %v804
        %v806 = vlaneseq
        %v807 = vshrl.u32 %v806, 7
        %v808 = vsub.s32 %v805, %v807
        %v809 = vrot.slane %v795, %v808
        %v810 = vcombine.high %v786, 0.0
        %v811 = vcombine.high %v793, 0.0
        %v812 = vcombine.high %v802, 0.0
        %v813 = vcombine.high %v809, 0.0
        %v814 = vcombine.low %v786, %v793
        %v816 = vunpack.c.l.s4 1983009808
        %v817 = vunpack.c.0.s8 %v816
        %v818 = vlaneseq
        %v819 = vshrl.u32 %v818, 7
        %v820 = vsub.s32 %v817, %v819
        %v821 = vrot.slane %v814, %v820
        %v822 = vcombine.low %v810, %v811
        %v824 = vunpack.c.l.s4 1983009808
        %v825 = vunpack.c.0.s8 %v824
        %v826 = vlaneseq
        %v827 = vshrl.u32 %v826, 7
        %v828 = vsub.s32 %v825, %v827
        %v829 = vrot.slane %v822, %v828
        %v830 = vcombine.low %v802, %v809
        %v832 = vunpack.c.l.s4 1983009808
        %v833 = vunpack.c.0.s8 %v832
        %v834 = vlaneseq
        %v835 = vshrl.u32 %v834, 7
        %v836 = vsub.s32 %v833, %v835
        %v837 = vrot.slane %v830, %v836
        %v838 = vcombine.low %v812, %v813
        %v840 = vunpack.c.l.s4 1983009808
        %v841 = vunpack.c.0.s8 %v840
        %v842 = vlaneseq
        %v843 = vshrl.u32 %v842, 7
        %v844 = vsub.s32 %v841, %v843
        %v845 = vrot.slane %v838, %v844
        %v846 = vcombine.low %v821, %v829
        %v847 = vcombine.high %v821, %v829
        %v849 = vunpack.c.l.s4 1934713408
        %v850 = vunpack.c.0.s8 %v849
        %v851 = vlaneseq
        %v852 = vshrl.u32 %v851, 7
        %v853 = vsub.s32 %v850, %v852
        %v854 = vrot.slane %v846, %v853
        %v856 = vunpack.c.l.s4 1934713408
        %v857 = vunpack.c.0.s8 %v856
        %v858 = vlaneseq
        %v859 = vshrl.u32 %v858, 7
        %v860 = vsub.s32 %v857, %v859
        %v861 = vrot.slane %v847, %v860
        %v862 = vcombine.low %v837, %v845
        %v863 = vcombine.high %v837, %v845
        %v865 = vunpack.c.l.s4 1934713408
        %v866 = vunpack.c.0.s8 %v865
        %v867 = vlaneseq
        %v868 = vshrl.u32 %v867, 7
        %v869 = vsub.s32 %v866, %v868
        %v870 = vrot.slane %v862, %v869
        %v872 = vunpack.c.l.s4 1934713408
        %v873 = vunpack.c.0.s8 %v872
        %v874 = vlaneseq
        %v875 = vshrl.u32 %v874, 7
        %v876 = vsub.s32 %v873, %v875
        %v877 = vrot.slane %v863, %v876
        %v878 = vcombine.low %v854, %v870
        %v879 = vcombine.high %v854, %v870
        %v880 = vcombine.low %v861, %v877
        %v881 = vcombine.high %v861, %v877
        %v882 = vpack.c.bf16 %v878, %v878
        %v883 = vpack.c.bf16 %v879, %v879
        %v884 = vpack.c.bf16 %v880, %v880
        %v885 = vpack.c.bf16 %v881, %v881
        %886 = vrot.lane.b32.xlu0 %v579, 64
        %v887 = vpop.permute.xlu0 %886
        %888 = vrot.lane.b32.xlu0 %v586, 64
        %v889 = vpop.permute.xlu0 %888
        %890 = vrot.lane.b32.xlu0 %v589, 64
        %v891 = vpop.permute.xlu0 %890
        %892 = vrot.lane.b32.xlu0 %v592, 64
        %v893 = vpop.permute.xlu0 %892
        %v898 = vcombine.low %v887, %v891
        %v899 = vcombine.high %v887, %v891
        %v901 = vunpack.c.l.s4 1983009808
        %v902 = vunpack.c.0.s8 %v901
        %v903 = vlaneseq
        %v904 = vshrl.u32 %v903, 7
        %v905 = vsub.s32 %v902, %v904
        %v906 = vrot.slane %v898, %v905
        %v908 = vunpack.c.l.s4 1983009808
        %v909 = vunpack.c.0.s8 %v908
        %v910 = vlaneseq
        %v911 = vshrl.u32 %v910, 7
        %v912 = vsub.s32 %v909, %v911
        %v913 = vrot.slane %v899, %v912
        %v914 = vcombine.low %v889, %v893
        %v915 = vcombine.high %v889, %v893
        %v917 = vunpack.c.l.s4 1983009808
        %v918 = vunpack.c.0.s8 %v917
        %v919 = vlaneseq
        %v920 = vshrl.u32 %v919, 7
        %v921 = vsub.s32 %v918, %v920
        %v922 = vrot.slane %v914, %v921
        %v924 = vunpack.c.l.s4 1983009808
        %v925 = vunpack.c.0.s8 %v924
        %v926 = vlaneseq
        %v927 = vshrl.u32 %v926, 7
        %v928 = vsub.s32 %v925, %v927
        %v929 = vrot.slane %v915, %v928
        %v930 = vcombine.low %v906, %v922
        %v931 = vcombine.high %v906, %v922
        %v933 = vunpack.c.l.s4 1934713408
        %v934 = vunpack.c.0.s8 %v933
        %v935 = vlaneseq
        %v936 = vshrl.u32 %v935, 7
        %v937 = vsub.s32 %v934, %v936
        %v938 = vrot.slane %v930, %v937
        %v940 = vunpack.c.l.s4 1934713408
        %v941 = vunpack.c.0.s8 %v940
        %v942 = vlaneseq
        %v943 = vshrl.u32 %v942, 7
        %v944 = vsub.s32 %v941, %v943
        %v945 = vrot.slane %v931, %v944
        %v946 = vcombine.low %v913, %v929
        %v947 = vcombine.high %v913, %v929
        %v949 = vunpack.c.l.s4 1934713408
        %v950 = vunpack.c.0.s8 %v949
        %v951 = vlaneseq
        %v952 = vshrl.u32 %v951, 7
        %v953 = vsub.s32 %v950, %v952
        %v954 = vrot.slane %v946, %v953
        %v956 = vunpack.c.l.s4 1934713408
        %v957 = vunpack.c.0.s8 %v956
        %v958 = vlaneseq
        %v959 = vshrl.u32 %v958, 7
        %v960 = vsub.s32 %v957, %v959
        %v961 = vrot.slane %v947, %v960
        %v962 = vcombine.high %v938, 0.0
        %v963 = vcombine.high %v945, 0.0
        %v964 = vcombine.high %v954, 0.0
        %v965 = vcombine.high %v961, 0.0
        %v966 = vcombine.low %v938, %v945
        %v968 = vunpack.c.l.s4 1983009808
        %v969 = vunpack.c.0.s8 %v968
        %v970 = vlaneseq
        %v971 = vshrl.u32 %v970, 7
        %v972 = vsub.s32 %v969, %v971
        %v973 = vrot.slane %v966, %v972
        %v974 = vcombine.low %v962, %v963
        %v976 = vunpack.c.l.s4 1983009808
        %v977 = vunpack.c.0.s8 %v976
        %v978 = vlaneseq
        %v979 = vshrl.u32 %v978, 7
        %v980 = vsub.s32 %v977, %v979
        %v981 = vrot.slane %v974, %v980
        %v982 = vcombine.low %v954, %v961
        %v984 = vunpack.c.l.s4 1983009808
        %v985 = vunpack.c.0.s8 %v984
        %v986 = vlaneseq
        %v987 = vshrl.u32 %v986, 7
        %v988 = vsub.s32 %v985, %v987
        %v989 = vrot.slane %v982, %v988
        %v990 = vcombine.low %v964, %v965
        %v992 = vunpack.c.l.s4 1983009808
        %v993 = vunpack.c.0.s8 %v992
        %v994 = vlaneseq
        %v995 = vshrl.u32 %v994, 7
        %v996 = vsub.s32 %v993, %v995
        %v997 = vrot.slane %v990, %v996
        %v998 = vcombine.low %v973, %v981
        %v999 = vcombine.high %v973, %v981
        %v1001 = vunpack.c.l.s4 1934713408
        %v1002 = vunpack.c.0.s8 %v1001
        %v1003 = vlaneseq
        %v1004 = vshrl.u32 %v1003, 7
        %v1005 = vsub.s32 %v1002, %v1004
        %v1006 = vrot.slane %v998, %v1005
        %v1008 = vunpack.c.l.s4 1934713408
        %v1009 = vunpack.c.0.s8 %v1008
        %v1010 = vlaneseq
        %v1011 = vshrl.u32 %v1010, 7
        %v1012 = vsub.s32 %v1009, %v1011
        %v1013 = vrot.slane %v999, %v1012
        %v1014 = vcombine.low %v989, %v997
        %v1015 = vcombine.high %v989, %v997
        %v1017 = vunpack.c.l.s4 1934713408
        %v1018 = vunpack.c.0.s8 %v1017
        %v1019 = vlaneseq
        %v1020 = vshrl.u32 %v1019, 7
        %v1021 = vsub.s32 %v1018, %v1020
        %v1022 = vrot.slane %v1014, %v1021
        %v1024 = vunpack.c.l.s4 1934713408
        %v1025 = vunpack.c.0.s8 %v1024
        %v1026 = vlaneseq
        %v1027 = vshrl.u32 %v1026, 7
        %v1028 = vsub.s32 %v1025, %v1027
        %v1029 = vrot.slane %v1015, %v1028
        %v1030 = vcombine.low %v1006, %v1022
        %v1031 = vcombine.high %v1006, %v1022
        %v1032 = vcombine.low %v1013, %v1029
        %v1033 = vcombine.high %v1013, %v1029
        %v1034 = vpack.c.bf16 %v1030, %v1030
        %v1035 = vpack.c.bf16 %v1031, %v1031
        %v1036 = vpack.c.bf16 %v1032, %v1032
        %v1037 = vpack.c.bf16 %v1033, %v1033
        %vm1038 = vcmask 64512
        %v1040 = vsel %vm1038, %v730, 0
        %v1043 = vsel %vm1038, %v882, 0
        %1045 = vmatprep.subr.bf16.mxu0 0
        %1046 = vmatpush1.bf16.xpose.msra.mxu0 0
        %1047 = vmatprep.subr.bf16.mxu0 0
        %1048 = vmatpush1.bf16.xpose.msra.mxu0 0
        %1049 = vmatprep.subr.bf16.mxu0 0
        %1050 = vmatpush1.bf16.xpose.msra.mxu0 0
        %1051 = vmatprep.subr.bf16.mxu0 0
        %1052 = vmatpush1.bf16.xpose.msra.mxu0 0
        %1053 = vmatprep.subr.bf16.mxu0 0
        %1054 = vmatpush1.bf16.xpose.msra.mxu0 0
        %1055 = vmatprep.subr.bf16.mxu0 0
        %1056 = vmatpush1.bf16.xpose.msra.mxu0 0
        %1057 = vmatprep.subr.bf16.mxu0 0
        %1058 = vmatpush1.bf16.xpose.msra.mxu0 0
        %1059 = vmatprep.subr.bf16.mxu0 0
        %1060 = vmatpush1.bf16.xpose.msra.mxu0 %v1043
        %1061 = vmatprep.subr.bf16.mxu0 0
        %1062 = vmatpush2.bf16.xpose.msra.mxu0 0
        %1063 = vmatprep.subr.bf16.mxu0 0
        %1064 = vmatpush2.bf16.xpose.msra.mxu0 0
        %1065 = vmatprep.subr.bf16.mxu0 0
        %1066 = vmatpush2.bf16.xpose.msra.mxu0 0
        %1067 = vmatprep.subr.bf16.mxu0 0
        %1068 = vmatpush2.bf16.xpose.msra.mxu0 0
        %1069 = vmatprep.subr.bf16.mxu0 0
        %1070 = vmatpush2.bf16.xpose.msra.mxu0 0
        %1071 = vmatprep.subr.bf16.mxu0 0
        %1072 = vmatpush2.bf16.xpose.msra.mxu0 0
        %1073 = vmatprep.subr.bf16.mxu0 0
        %1074 = vmatpush2.bf16.xpose.msra.mxu0 0
        %1075 = vmatprep.subr.bf16.mxu0 0
        %1076 = vmatpush2.bf16.xpose.msra.mxu0 0
        %1077 = vmatprep.mubr.bf16.mxu0 0
        %1078 = vmatmul.mubr.bf16.gmra.mxu0 %v1040
        %v1079 = vpop.f32.mrf.mxu0
        %v1080 = vadd.f32 0.0, %v1079
        %v1081 = vpop.f32.mrf.mxu0
        %v1082 = vpop.f32.mrf.mxu0
        %v1083 = vpop.f32.mrf.mxu0
        %1084 = vdwg.mxu0
        %v1086 = vsel %vm1038, %v731, 0
        %v1089 = vsel %vm1038, %v883, 0
        %1091 = vmatprep.subr.bf16.mxu0 0
        %1092 = vmatpush1.bf16.xpose.msra.mxu0 0
        %1093 = vmatprep.subr.bf16.mxu0 0
        %1094 = vmatpush1.bf16.xpose.msra.mxu0 0
        %1095 = vmatprep.subr.bf16.mxu0 0
        %1096 = vmatpush1.bf16.xpose.msra.mxu0 0
        %1097 = vmatprep.subr.bf16.mxu0 0
        %1098 = vmatpush1.bf16.xpose.msra.mxu0 0
        %1099 = vmatprep.subr.bf16.mxu0 0
        %1100 = vmatpush1.bf16.xpose.msra.mxu0 0
        %1101 = vmatprep.subr.bf16.mxu0 0
        %1102 = vmatpush1.bf16.xpose.msra.mxu0 0
        %1103 = vmatprep.subr.bf16.mxu0 0
        %1104 = vmatpush1.bf16.xpose.msra.mxu0 0
        %1105 = vmatprep.subr.bf16.mxu0 0
        %1106 = vmatpush1.bf16.xpose.msra.mxu0 %v1089
        %1107 = vmatprep.subr.bf16.mxu0 0
        %1108 = vmatpush2.bf16.xpose.msra.mxu0 0
        %1109 = vmatprep.subr.bf16.mxu0 0
        %1110 = vmatpush2.bf16.xpose.msra.mxu0 0
        %1111 = vmatprep.subr.bf16.mxu0 0
        %1112 = vmatpush2.bf16.xpose.msra.mxu0 0
        %1113 = vmatprep.subr.bf16.mxu0 0
        %1114 = vmatpush2.bf16.xpose.msra.mxu0 0
        %1115 = vmatprep.subr.bf16.mxu0 0
        %1116 = vmatpush2.bf16.xpose.msra.mxu0 0
        %1117 = vmatprep.subr.bf16.mxu0 0
        %1118 = vmatpush2.bf16.xpose.msra.mxu0 0
        %1119 = vmatprep.subr.bf16.mxu0 0
        %1120 = vmatpush2.bf16.xpose.msra.mxu0 0
        %1121 = vmatprep.subr.bf16.mxu0 0
        %1122 = vmatpush2.bf16.xpose.msra.mxu0 0
        %1123 = vmatprep.mubr.bf16.mxu0 0
        %1124 = vmatmul.mubr.bf16.gmra.mxu0 %v1086
        %v1125 = vpop.f32.mrf.mxu0
        %v1126 = vadd.f32 0.0, %v1125
        %v1127 = vpop.f32.mrf.mxu0
        %v1128 = vpop.f32.mrf.mxu0
        %v1129 = vpop.f32.mrf.mxu0
        %1130 = vdwg.mxu0
        %v1132 = vsel %vm1038, %v732, 0
        %v1135 = vsel %vm1038, %v884, 0
        %1137 = vmatprep.subr.bf16.mxu0 0
        %1138 = vmatpush1.bf16.xpose.msra.mxu0 0
        %1139 = vmatprep.subr.bf16.mxu0 0
        %1140 = vmatpush1.bf16.xpose.msra.mxu0 0
        %1141 = vmatprep.subr.bf16.mxu0 0
        %1142 = vmatpush1.bf16.xpose.msra.mxu0 0
        %1143 = vmatprep.subr.bf16.mxu0 0
        %1144 = vmatpush1.bf16.xpose.msra.mxu0 0
        %1145 = vmatprep.subr.bf16.mxu0 0
        %1146 = vmatpush1.bf16.xpose.msra.mxu0 0
        %1147 = vmatprep.subr.bf16.mxu0 0
        %1148 = vmatpush1.bf16.xpose.msra.mxu0 0
        %1149 = vmatprep.subr.bf16.mxu0 0
        %1150 = vmatpush1.bf16.xpose.msra.mxu0 0
        %1151 = vmatprep.subr.bf16.mxu0 0
        %1152 = vmatpush1.bf16.xpose.msra.mxu0 %v1135
        %1153 = vmatprep.subr.bf16.mxu0 0
        %1154 = vmatpush2.bf16.xpose.msra.mxu0 0
        %1155 = vmatprep.subr.bf16.mxu0 0
        %1156 = vmatpush2.bf16.xpose.msra.mxu0 0
        %1157 = vmatprep.subr.bf16.mxu0 0
        %1158 = vmatpush2.bf16.xpose.msra.mxu0 0
        %1159 = vmatprep.subr.bf16.mxu0 0
        %1160 = vmatpush2.bf16.xpose.msra.mxu0 0
        %1161 = vmatprep.subr.bf16.mxu0 0
        %1162 = vmatpush2.bf16.xpose.msra.mxu0 0
        %1163 = vmatprep.subr.bf16.mxu0 0
        %1164 = vmatpush2.bf16.xpose.msra.mxu0 0
        %1165 = vmatprep.subr.bf16.mxu0 0
        %1166 = vmatpush2.bf16.xpose.msra.mxu0 0
        %1167 = vmatprep.subr.bf16.mxu0 0
        %1168 = vmatpush2.bf16.xpose.msra.mxu0 0
        %1169 = vmatprep.mubr.bf16.mxu0 0
        %1170 = vmatmul.mubr.bf16.gmra.mxu0 %v1132
        %v1171 = vpop.f32.mrf.mxu0
        %v1172 = vadd.f32 0.0, %v1171
        %v1173 = vpop.f32.mrf.mxu0
        %v1174 = vpop.f32.mrf.mxu0
        %v1175 = vpop.f32.mrf.mxu0
        %1176 = vdwg.mxu0
        %v1178 = vsel %vm1038, %v733, 0
        %v1181 = vsel %vm1038, %v885, 0
        %1183 = vmatprep.subr.bf16.mxu0 0
        %1184 = vmatpush1.bf16.xpose.msra.mxu0 0
        %1185 = vmatprep.subr.bf16.mxu0 0
        %1186 = vmatpush1.bf16.xpose.msra.mxu0 0
        %1187 = vmatprep.subr.bf16.mxu0 0
        %1188 = vmatpush1.bf16.xpose.msra.mxu0 0
        %1189 = vmatprep.subr.bf16.mxu0 0
        %1190 = vmatpush1.bf16.xpose.msra.mxu0 0
        %1191 = vmatprep.subr.bf16.mxu0 0
        %1192 = vmatpush1.bf16.xpose.msra.mxu0 0
        %1193 = vmatprep.subr.bf16.mxu0 0
        %1194 = vmatpush1.bf16.xpose.msra.mxu0 0
        %1195 = vmatprep.subr.bf16.mxu0 0
        %1196 = vmatpush1.bf16.xpose.msra.mxu0 0
        %1197 = vmatprep.subr.bf16.mxu0 0
        %1198 = vmatpush1.bf16.xpose.msra.mxu0 %v1181
        %1199 = vmatprep.subr.bf16.mxu0 0
        %1200 = vmatpush2.bf16.xpose.msra.mxu0 0
        %1201 = vmatprep.subr.bf16.mxu0 0
        %1202 = vmatpush2.bf16.xpose.msra.mxu0 0
        %1203 = vmatprep.subr.bf16.mxu0 0
        %1204 = vmatpush2.bf16.xpose.msra.mxu0 0
        %1205 = vmatprep.subr.bf16.mxu0 0
        %1206 = vmatpush2.bf16.xpose.msra.mxu0 0
        %1207 = vmatprep.subr.bf16.mxu0 0
        %1208 = vmatpush2.bf16.xpose.msra.mxu0 0
        %1209 = vmatprep.subr.bf16.mxu0 0
        %1210 = vmatpush2.bf16.xpose.msra.mxu0 0
        %1211 = vmatprep.subr.bf16.mxu0 0
        %1212 = vmatpush2.bf16.xpose.msra.mxu0 0
        %1213 = vmatprep.subr.bf16.mxu0 0
        %1214 = vmatpush2.bf16.xpose.msra.mxu0 0
        %1215 = vmatprep.mubr.bf16.mxu0 0
        %1216 = vmatmul.mubr.bf16.gmra.mxu0 %v1178
        %v1217 = vpop.f32.mrf.mxu0
        %v1218 = vadd.f32 0.0, %v1217
        %v1219 = vpop.f32.mrf.mxu0
        %v1220 = vpop.f32.mrf.mxu0
        %v1221 = vpop.f32.mrf.mxu0
        %1222 = vdwg.mxu0
        %v1223 = vsel %vm1038, %v1080, -inf
        %1224 = vmax.xlane.f32.xlu0 %v1223
        %v1225 = vpop.xlane.xlu0 %1224
        %v1226 = vsel %vm1038, %v1126, -inf
        %1227 = vmax.xlane.f32.xlu0 %v1226
        %v1228 = vpop.xlane.xlu0 %1227
        %v1229 = vsel %vm1038, %v1172, -inf
        %1230 = vmax.xlane.f32.xlu0 %v1229
        %v1231 = vpop.xlane.xlu0 %1230
        %v1232 = vsel %vm1038, %v1218, -inf
        %1233 = vmax.xlane.f32.xlu0 %v1232
        %v1234 = vpop.xlane.xlu0 %1233
        %v1235 = vsub.f32 %v1080, %v1225
        %v1236 = vsub.f32 %v1126, %v1228
        %v1237 = vsub.f32 %v1172, %v1231
        %v1238 = vsub.f32 %v1218, %v1234
        %v1239 = vmul.f32 %v1235, 1.442695
        %v1240 = vpow.pop %v1239
        %v1241 = vmul.f32 %v1236, 1.442695
        %v1242 = vpow.pop %v1241
        %v1243 = vmul.f32 %v1237, 1.442695
        %v1244 = vpow.pop %v1243
        %v1245 = vmul.f32 %v1238, 1.442695
        %v1246 = vpow.pop %v1245
        %v1247 = vsel %vm1038, %v1240, 0.0
        %1248 = vadd.xlane.f32.xlu0 %v1247
        %v1249 = vpop.xlane.xlu0 %1248
        %v1250 = vsel %vm1038, %v1242, 0.0
        %1251 = vadd.xlane.f32.xlu0 %v1250
        %v1252 = vpop.xlane.xlu0 %1251
        %v1253 = vsel %vm1038, %v1244, 0.0
        %1254 = vadd.xlane.f32.xlu0 %v1253
        %v1255 = vpop.xlane.xlu0 %1254
        %v1256 = vsel %vm1038, %v1246, 0.0
        %1257 = vadd.xlane.f32.xlu0 %v1256
        %v1258 = vpop.xlane.xlu0 %1257
        %v1259 = vrcp.pop %v1249
        %v1260 = vrcp.pop %v1252
        %v1261 = vrcp.pop %v1255
        %v1262 = vrcp.pop %v1258
        %v1263 = vmul.f32 %v1240, %v1259
        %v1264 = vmul.f32 %v1242, %v1260
        %v1265 = vmul.f32 %v1244, %v1261
        %v1266 = vmul.f32 %v1246, %v1262
        %v1267 = vpack.c.bf16 %v1263, %v1263
        %v1268 = vpack.c.bf16 %v1264, %v1264
        %v1269 = vpack.c.bf16 %v1265, %v1265
        %v1270 = vpack.c.bf16 %v1266, %v1266
        %v1272 = vsel %vm1038, %v1267, 0
        %vm1274 = vcmask 1043456
        %v1276 = vsel %vm1274, %v1034, 0
        %1278 = vmatprep.subr.bf16.mxu0 0
        %1279 = vmatpush1.bf16.msra.mxu0 0
        %1280 = vmatprep.subr.bf16.mxu0 0
        %1281 = vmatpush1.bf16.msra.mxu0 0
        %1282 = vmatprep.subr.bf16.mxu0 0
        %1283 = vmatpush1.bf16.msra.mxu0 0
        %1284 = vmatprep.subr.bf16.mxu0 0
        %1285 = vmatpush1.bf16.msra.mxu0 0
        %1286 = vmatprep.subr.bf16.mxu0 0
        %1287 = vmatpush1.bf16.msra.mxu0 0
        %1288 = vmatprep.subr.bf16.mxu0 0
        %1289 = vmatpush1.bf16.msra.mxu0 0
        %1290 = vmatprep.subr.bf16.mxu0 0
        %1291 = vmatpush1.bf16.msra.mxu0 0
        %1292 = vmatprep.subr.bf16.mxu0 0
        %1293 = vmatpush1.bf16.msra.mxu0 %v1276
        %1294 = vmatprep.subr.bf16.mxu0 0
        %1295 = vmatpush2.bf16.msra.mxu0 0
        %1296 = vmatprep.subr.bf16.mxu0 0
        %1297 = vmatpush2.bf16.msra.mxu0 0
        %1298 = vmatprep.subr.bf16.mxu0 0
        %1299 = vmatpush2.bf16.msra.mxu0 0
        %1300 = vmatprep.subr.bf16.mxu0 0
        %1301 = vmatpush2.bf16.msra.mxu0 0
        %1302 = vmatprep.subr.bf16.mxu0 0
        %1303 = vmatpush2.bf16.msra.mxu0 0
        %1304 = vmatprep.subr.bf16.mxu0 0
        %1305 = vmatpush2.bf16.msra.mxu0 0
        %1306 = vmatprep.subr.bf16.mxu0 0
        %1307 = vmatpush2.bf16.msra.mxu0 0
        %1308 = vmatprep.subr.bf16.mxu0 0
        %1309 = vmatpush2.bf16.msra.mxu0 0
        %1310 = vmatprep.mubr.bf16.mxu0 0
        %1311 = vmatmul.mubr.bf16.gmra.mxu0 %v1272
        %v1312 = vpop.f32.mrf.mxu0
        %v1313 = vadd.f32 0.0, %v1312
        %v1314 = vpop.f32.mrf.mxu0
        %v1315 = vpop.f32.mrf.mxu0
        %v1316 = vpop.f32.mrf.mxu0
        %1317 = vdwg.mxu0
        %v1319 = vsel %vm1038, %v1268, 0
        %v1322 = vsel %vm1274, %v1035, 0
        %1324 = vmatprep.subr.bf16.mxu0 0
        %1325 = vmatpush1.bf16.msra.mxu0 0
        %1326 = vmatprep.subr.bf16.mxu0 0
        %1327 = vmatpush1.bf16.msra.mxu0 0
        %1328 = vmatprep.subr.bf16.mxu0 0
        %1329 = vmatpush1.bf16.msra.mxu0 0
        %1330 = vmatprep.subr.bf16.mxu0 0
        %1331 = vmatpush1.bf16.msra.mxu0 0
        %1332 = vmatprep.subr.bf16.mxu0 0
        %1333 = vmatpush1.bf16.msra.mxu0 0
        %1334 = vmatprep.subr.bf16.mxu0 0
        %1335 = vmatpush1.bf16.msra.mxu0 0
        %1336 = vmatprep.subr.bf16.mxu0 0
        %1337 = vmatpush1.bf16.msra.mxu0 0
        %1338 = vmatprep.subr.bf16.mxu0 0
        %1339 = vmatpush1.bf16.msra.mxu0 %v1322
        %1340 = vmatprep.subr.bf16.mxu0 0
        %1341 = vmatpush2.bf16.msra.mxu0 0
        %1342 = vmatprep.subr.bf16.mxu0 0
        %1343 = vmatpush2.bf16.msra.mxu0 0
        %1344 = vmatprep.subr.bf16.mxu0 0
        %1345 = vmatpush2.bf16.msra.mxu0 0
        %1346 = vmatprep.subr.bf16.mxu0 0
        %1347 = vmatpush2.bf16.msra.mxu0 0
        %1348 = vmatprep.subr.bf16.mxu0 0
        %1349 = vmatpush2.bf16.msra.mxu0 0
        %1350 = vmatprep.subr.bf16.mxu0 0
        %1351 = vmatpush2.bf16.msra.mxu0 0
        %1352 = vmatprep.subr.bf16.mxu0 0
        %1353 = vmatpush2.bf16.msra.mxu0 0
        %1354 = vmatprep.subr.bf16.mxu0 0
        %1355 = vmatpush2.bf16.msra.mxu0 0
        %1356 = vmatprep.mubr.bf16.mxu0 0
        %1357 = vmatmul.mubr.bf16.gmra.mxu0 %v1319
        %v1358 = vpop.f32.mrf.mxu0
        %v1359 = vadd.f32 0.0, %v1358
        %v1360 = vpop.f32.mrf.mxu0
        %v1361 = vpop.f32.mrf.mxu0
        %v1362 = vpop.f32.mrf.mxu0
        %1363 = vdwg.mxu0
        %v1365 = vsel %vm1038, %v1269, 0
        %v1368 = vsel %vm1274, %v1036, 0
        %1370 = vmatprep.subr.bf16.mxu0 0
        %1371 = vmatpush1.bf16.msra.mxu0 0
        %1372 = vmatprep.subr.bf16.mxu0 0
        %1373 = vmatpush1.bf16.msra.mxu0 0
        %1374 = vmatprep.subr.bf16.mxu0 0
        %1375 = vmatpush1.bf16.msra.mxu0 0
        %1376 = vmatprep.subr.bf16.mxu0 0
        %1377 = vmatpush1.bf16.msra.mxu0 0
        %1378 = vmatprep.subr.bf16.mxu0 0
        %1379 = vmatpush1.bf16.msra.mxu0 0
        %1380 = vmatprep.subr.bf16.mxu0 0
        %1381 = vmatpush1.bf16.msra.mxu0 0
        %1382 = vmatprep.subr.bf16.mxu0 0
        %1383 = vmatpush1.bf16.msra.mxu0 0
        %1384 = vmatprep.subr.bf16.mxu0 0
        %1385 = vmatpush1.bf16.msra.mxu0 %v1368
        %1386 = vmatprep.subr.bf16.mxu0 0
        %1387 = vmatpush2.bf16.msra.mxu0 0
        %1388 = vmatprep.subr.bf16.mxu0 0
        %1389 = vmatpush2.bf16.msra.mxu0 0
        %1390 = vmatprep.subr.bf16.mxu0 0
        %1391 = vmatpush2.bf16.msra.mxu0 0
        %1392 = vmatprep.subr.bf16.mxu0 0
        %1393 = vmatpush2.bf16.msra.mxu0 0
        %1394 = vmatprep.subr.bf16.mxu0 0
        %1395 = vmatpush2.bf16.msra.mxu0 0
        %1396 = vmatprep.subr.bf16.mxu0 0
        %1397 = vmatpush2.bf16.msra.mxu0 0
        %1398 = vmatprep.subr.bf16.mxu0 0
        %1399 = vmatpush2.bf16.msra.mxu0 0
        %1400 = vmatprep.subr.bf16.mxu0 0
        %1401 = vmatpush2.bf16.msra.mxu0 0
        %1402 = vmatprep.mubr.bf16.mxu0 0
        %1403 = vmatmul.mubr.bf16.gmra.mxu0 %v1365
        %v1404 = vpop.f32.mrf.mxu0
        %v1405 = vadd.f32 0.0, %v1404
        %v1406 = vpop.f32.mrf.mxu0
        %v1407 = vpop.f32.mrf.mxu0
        %v1408 = vpop.f32.mrf.mxu0
        %1409 = vdwg.mxu0
        %v1411 = vsel %vm1038, %v1270, 0
        %v1414 = vsel %vm1274, %v1037, 0
        %1416 = vmatprep.subr.bf16.mxu0 0
        %1417 = vmatpush1.bf16.msra.mxu0 0
        %1418 = vmatprep.subr.bf16.mxu0 0
        %1419 = vmatpush1.bf16.msra.mxu0 0
        %1420 = vmatprep.subr.bf16.mxu0 0
        %1421 = vmatpush1.bf16.msra.mxu0 0
        %1422 = vmatprep.subr.bf16.mxu0 0
        %1423 = vmatpush1.bf16.msra.mxu0 0
        %1424 = vmatprep.subr.bf16.mxu0 0
        %1425 = vmatpush1.bf16.msra.mxu0 0
        %1426 = vmatprep.subr.bf16.mxu0 0
        %1427 = vmatpush1.bf16.msra.mxu0 0
        %1428 = vmatprep.subr.bf16.mxu0 0
        %1429 = vmatpush1.bf16.msra.mxu0 0
        %1430 = vmatprep.subr.bf16.mxu0 0
        %1431 = vmatpush1.bf16.msra.mxu0 %v1414
        %1432 = vmatprep.subr.bf16.mxu0 0
        %1433 = vmatpush2.bf16.msra.mxu0 0
        %1434 = vmatprep.subr.bf16.mxu0 0
        %1435 = vmatpush2.bf16.msra.mxu0 0
        %1436 = vmatprep.subr.bf16.mxu0 0
        %1437 = vmatpush2.bf16.msra.mxu0 0
        %1438 = vmatprep.subr.bf16.mxu0 0
        %1439 = vmatpush2.bf16.msra.mxu0 0
        %1440 = vmatprep.subr.bf16.mxu0 0
        %1441 = vmatpush2.bf16.msra.mxu0 0
        %1442 = vmatprep.subr.bf16.mxu0 0
        %1443 = vmatpush2.bf16.msra.mxu0 0
        %1444 = vmatprep.subr.bf16.mxu0 0
        %1445 = vmatpush2.bf16.msra.mxu0 0
        %1446 = vmatprep.subr.bf16.mxu0 0
        %1447 = vmatpush2.bf16.msra.mxu0 0
        %1448 = vmatprep.mubr.bf16.mxu0 0
        %1449 = vmatmul.mubr.bf16.gmra.mxu0 %v1411
        %v1450 = vpop.f32.mrf.mxu0
        %v1451 = vadd.f32 0.0, %v1450
        %v1452 = vpop.f32.mrf.mxu0
        %v1453 = vpop.f32.mrf.mxu0
        %v1454 = vpop.f32.mrf.mxu0
        %1455 = vdwg.mxu0
        %v1456 = vcombine.low %v1313, %v1405
        %v1457 = vcombine.high %v1313, %v1405
        %v1459 = vunpack.c.l.s4 1983009808
        %v1460 = vunpack.c.0.s8 %v1459
        %v1461 = vlaneseq
        %v1462 = vshrl.u32 %v1461, 7
        %v1463 = vsub.s32 %v1460, %v1462
        %v1464 = vrot.slane %v1456, %v1463
        %v1466 = vunpack.c.l.s4 1983009808
        %v1467 = vunpack.c.0.s8 %v1466
        %v1468 = vlaneseq
        %v1469 = vshrl.u32 %v1468, 7
        %v1470 = vsub.s32 %v1467, %v1469
        %v1471 = vrot.slane %v1457, %v1470
        %v1472 = vcombine.low %v1359, %v1451
        %v1473 = vcombine.high %v1359, %v1451
        %v1475 = vunpack.c.l.s4 1983009808
        %v1476 = vunpack.c.0.s8 %v1475
        %v1477 = vlaneseq
        %v1478 = vshrl.u32 %v1477, 7
        %v1479 = vsub.s32 %v1476, %v1478
        %v1480 = vrot.slane %v1472, %v1479
        %v1482 = vunpack.c.l.s4 1983009808
        %v1483 = vunpack.c.0.s8 %v1482
        %v1484 = vlaneseq
        %v1485 = vshrl.u32 %v1484, 7
        %v1486 = vsub.s32 %v1483, %v1485
        %v1487 = vrot.slane %v1473, %v1486
        %v1488 = vcombine.low %v1464, %v1480
        %v1489 = vcombine.high %v1464, %v1480
        %v1491 = vunpack.c.l.s4 1934713408
        %v1492 = vunpack.c.0.s8 %v1491
        %v1493 = vlaneseq
        %v1494 = vshrl.u32 %v1493, 7
        %v1495 = vsub.s32 %v1492, %v1494
        %v1496 = vrot.slane %v1488, %v1495
        %v1498 = vunpack.c.l.s4 1934713408
        %v1499 = vunpack.c.0.s8 %v1498
        %v1500 = vlaneseq
        %v1501 = vshrl.u32 %v1500, 7
        %v1502 = vsub.s32 %v1499, %v1501
        %v1503 = vrot.slane %v1489, %v1502
        %v1504 = vcombine.low %v1471, %v1487
        %v1505 = vcombine.high %v1471, %v1487
        %v1507 = vunpack.c.l.s4 1934713408
        %v1508 = vunpack.c.0.s8 %v1507
        %v1509 = vlaneseq
        %v1510 = vshrl.u32 %v1509, 7
        %v1511 = vsub.s32 %v1508, %v1510
        %v1512 = vrot.slane %v1504, %v1511
        %v1514 = vunpack.c.l.s4 1934713408
        %v1515 = vunpack.c.0.s8 %v1514
        %v1516 = vlaneseq
        %v1517 = vshrl.u32 %v1516, 7
        %v1518 = vsub.s32 %v1515, %v1517
        %v1519 = vrot.slane %v1505, %v1518
        %v1520 = vcombine.high %v1496, 0.0
        %v1521 = vcombine.high %v1503, 0.0
        %v1522 = vcombine.high %v1512, 0.0
        %v1523 = vcombine.high %v1519, 0.0
        %v1524 = vcombine.low %v1496, %v1503
        %v1526 = vunpack.c.l.s4 1983009808
        %v1527 = vunpack.c.0.s8 %v1526
        %v1528 = vlaneseq
        %v1529 = vshrl.u32 %v1528, 7
        %v1530 = vsub.s32 %v1527, %v1529
        %v1531 = vrot.slane %v1524, %v1530
        %v1532 = vcombine.low %v1520, %v1521
        %v1534 = vunpack.c.l.s4 1983009808
        %v1535 = vunpack.c.0.s8 %v1534
        %v1536 = vlaneseq
        %v1537 = vshrl.u32 %v1536, 7
        %v1538 = vsub.s32 %v1535, %v1537
        %v1539 = vrot.slane %v1532, %v1538
        %v1540 = vcombine.low %v1512, %v1519
        %v1542 = vunpack.c.l.s4 1983009808
        %v1543 = vunpack.c.0.s8 %v1542
        %v1544 = vlaneseq
        %v1545 = vshrl.u32 %v1544, 7
        %v1546 = vsub.s32 %v1543, %v1545
        %v1547 = vrot.slane %v1540, %v1546
        %v1548 = vcombine.low %v1522, %v1523
        %v1550 = vunpack.c.l.s4 1983009808
        %v1551 = vunpack.c.0.s8 %v1550
        %v1552 = vlaneseq
        %v1553 = vshrl.u32 %v1552, 7
        %v1554 = vsub.s32 %v1551, %v1553
        %v1555 = vrot.slane %v1548, %v1554
        %v1556 = vcombine.low %v1531, %v1539
        %v1557 = vcombine.high %v1531, %v1539
        %v1559 = vunpack.c.l.s4 1934713408
        %v1560 = vunpack.c.0.s8 %v1559
        %v1561 = vlaneseq
        %v1562 = vshrl.u32 %v1561, 7
        %v1563 = vsub.s32 %v1560, %v1562
        %v1564 = vrot.slane %v1556, %v1563
        %v1566 = vunpack.c.l.s4 1934713408
        %v1567 = vunpack.c.0.s8 %v1566
        %v1568 = vlaneseq
        %v1569 = vshrl.u32 %v1568, 7
        %v1570 = vsub.s32 %v1567, %v1569
        %v1571 = vrot.slane %v1557, %v1570
        %v1572 = vcombine.low %v1547, %v1555
        %v1573 = vcombine.high %v1547, %v1555
        %v1575 = vunpack.c.l.s4 1934713408
        %v1576 = vunpack.c.0.s8 %v1575
        %v1577 = vlaneseq
        %v1578 = vshrl.u32 %v1577, 7
        %v1579 = vsub.s32 %v1576, %v1578
        %v1580 = vrot.slane %v1572, %v1579
        %v1582 = vunpack.c.l.s4 1934713408
        %v1583 = vunpack.c.0.s8 %v1582
        %v1584 = vlaneseq
        %v1585 = vshrl.u32 %v1584, 7
        %v1586 = vsub.s32 %v1583, %v1585
        %v1587 = vrot.slane %v1573, %v1586
        %v1588 = vcombine.low %v1564, %v1580
        %v1589 = vcombine.high %v1564, %v1580
        %v1590 = vcombine.low %v1571, %v1587
        %v1591 = vcombine.high %v1571, %v1587
        %1593 = vrot.lane.b32.xlu0 %v1589, 8
        %v1594 = vpop.permute.xlu0 %1593
        %1597 = vrot.lane.b32.xlu0 %v1590, 16
        %v1598 = vpop.permute.xlu0 %1597
        %1601 = vrot.lane.b32.xlu0 %v1591, 24
        %v1602 = vpop.permute.xlu0 %1601
        %v1604 = vsel %vm1038, %v1588, %v1594
        %vm1605 = vcmask 130048
        %v1606 = vsel %vm1605, %v1604, %v1598
        %vm1607 = vcmask 195584
        %v1608 = vsel %vm1607, %v1606, %v1602
        %v1609 = vpack.c.bf16 %v1608, %v1608
        %v1610 = vld [vmem:[%s3] sm:$0xf]
        %v1611 = vld [vmem:[%s3 + $0x4] sm:$0xf]
        %v1612 = vld [vmem:[%s3 + $0x8] sm:$0xf]
        %v1613 = vld [vmem:[%s3 + $0xc] sm:$0xf]
        %v1614 = vld [vmem:[#allocation5] sm:$0x1]
        %v1616 = vlaneseq
        %v1617 = vshrl.u32 %v1616, 7
        %v1618 = vsub.s32 0, %v1617
        %v1619 = vrot.slane %v1614, %v1618
        %v1625 = vunpack.c.l.b16 %v1610
        %v1626 = vunpack.c.l.b16 %v1611
        %v1627 = vunpack.c.l.b16 %v1612
        %v1628 = vunpack.c.l.b16 %v1613
        %v1629 = vpack.c.b16 %v1626, %v1625
        %v1630 = vpack.c.b16 %v1628, %v1627
        %v1634 = vsel %vm540, %v1609, 0
        %1636 = vmatprep.subr.bf16.mxu0 0
        %1637 = vmatpush1.bf16.msra.mxu0 0
        %1638 = vmatprep.subr.bf16.mxu0 0
        %1639 = vmatpush1.bf16.msra.mxu0 0
        %1640 = vmatprep.subr.bf16.mxu0 0
        %1641 = vmatpush1.bf16.msra.mxu0 0
        %1642 = vmatprep.subr.bf16.mxu0 0
        %1643 = vmatpush1.bf16.msra.mxu0 0
        %1644 = vmatprep.subr.bf16.mxu0 0
        %1645 = vmatpush1.bf16.msra.mxu0 0
        %1646 = vmatprep.subr.bf16.mxu0 0
        %1647 = vmatpush1.bf16.msra.mxu0 0
        %1648 = vmatprep.subr.bf16.mxu0 0
        %1649 = vmatpush1.bf16.msra.mxu0 %v1630
        %1650 = vmatprep.subr.bf16.mxu0 0
        %1651 = vmatpush1.bf16.msra.mxu0 %v1629
        %1652 = vmatprep.subr.bf16.mxu0 0
        %1653 = vmatpush2.bf16.msra.mxu0 0
        %1654 = vmatprep.subr.bf16.mxu0 0
        %1655 = vmatpush2.bf16.msra.mxu0 0
        %1656 = vmatprep.subr.bf16.mxu0 0
        %1657 = vmatpush2.bf16.msra.mxu0 0
        %1658 = vmatprep.subr.bf16.mxu0 0
        %1659 = vmatpush2.bf16.msra.mxu0 0
        %1660 = vmatprep.subr.bf16.mxu0 0
        %1661 = vmatpush2.bf16.msra.mxu0 0
        %1662 = vmatprep.subr.bf16.mxu0 0
        %1663 = vmatpush2.bf16.msra.mxu0 0
        %1664 = vmatprep.subr.bf16.mxu0 0
        %1665 = vmatpush2.bf16.msra.mxu0 0
        %1666 = vmatprep.subr.bf16.mxu0 0
        %1667 = vmatpush2.bf16.msra.mxu0 0
        %1668 = vmatprep.mubr.bf16.mxu0 0
        %1669 = vmatmul.mubr.bf16.gmra.mxu0 %v1634
        %v1670 = vpop.f32.mrf.mxu0
        %v1671 = vadd.f32 %v1619, %v1670
        %v1672 = vpop.f32.mrf.mxu0
        %v1673 = vpop.f32.mrf.mxu0
        %v1674 = vpop.f32.mrf.mxu0
        %1675 = vdwg.mxu0
        %v1676 = vadd.f32 %v515, %v1671
        %v1677 = vld [vmem:[#allocation7] sm:$0x1]
        %v1678 = vld [vmem:[#allocation8] sm:$0x1]
        %v1679 = vsel %vm540, %v1676, 0.0
        %1680 = vadd.xlane.f32.xlu0 %v1679
        %v1681 = vpop.xlane.xlu0 %1680
        %v1682 = vrcp.pop 32.0
        %v1683 = vmul.f32 %v1681, %v1682
        %v1684 = vsub.f32 %v1676, %v1683
        %v1685 = vmul.f32 %v1684, %v1684
        %v1686 = vsel %vm540, %v1685, 0.0
        %1687 = vadd.xlane.f32.xlu0 %v1686
        %v1688 = vpop.xlane.xlu0 %1687
        %v1689 = vmul.f32 %v1688, %v1682
        %v1690 = vadd.f32 %v1689, 1e-05
        %v1691 = vrsqrt.pop %v1690
        %v1692 = vmul.f32 %v1684, %v1691
        %v1694 = vlaneseq
        %v1695 = vshrl.u32 %v1694, 7
        %v1696 = vsub.s32 0, %v1695
        %v1697 = vrot.slane %v1677, %v1696
        %v1699 = vmul.f32 %v1692, %v1697
        %v1701 = vlaneseq
        %v1702 = vshrl.u32 %v1701, 7
        %v1703 = vsub.s32 0, %v1702
        %v1704 = vrot.slane %v1678, %v1703
        %v1706 = vadd.f32 %v1699, %v1704
        %v1707 = vpack.c.bf16 %v1706, %v1706
        %v1708 = vld [vmem:[#allocation10] sm:$0xf]
        %v1709 = vld [vmem:[#allocation10 + $0x4] sm:$0xf]
        %v1710 = vld [vmem:[#allocation10 + $0x8] sm:$0xf]
        %v1711 = vld [vmem:[#allocation10 + $0xc] sm:$0xf]
        %v1712 = vld [vmem:[#allocation11] sm:$0x1]
        %v1714 = vlaneseq
        %v1715 = vshrl.u32 %v1714, 7
        %v1716 = vsub.s32 0, %v1715
        %v1717 = vrot.slane %v1712, %v1716
        %v1723 = vunpack.c.l.b16 %v1708
        %v1724 = vunpack.c.l.b16 %v1709
        %v1725 = vunpack.c.l.b16 %v1710
        %v1726 = vunpack.c.l.b16 %v1711
        %v1727 = vpack.c.b16 %v1724, %v1723
        %v1728 = vpack.c.b16 %v1726, %v1725
        %v1732 = vsel %vm540, %v1707, 0
        %1734 = vmatprep.subr.bf16.mxu0 0
        %1735 = vmatpush1.bf16.msra.mxu0 0
        %1736 = vmatprep.subr.bf16.mxu0 0
        %1737 = vmatpush1.bf16.msra.mxu0 0
        %1738 = vmatprep.subr.bf16.mxu0 0
        %1739 = vmatpush1.bf16.msra.mxu0 0
        %1740 = vmatprep.subr.bf16.mxu0 0
        %1741 = vmatpush1.bf16.msra.mxu0 0
        %1742 = vmatprep.subr.bf16.mxu0 0
        %1743 = vmatpush1.bf16.msra.mxu0 0
        %1744 = vmatprep.subr.bf16.mxu0 0
        %1745 = vmatpush1.bf16.msra.mxu0 0
        %1746 = vmatprep.subr.bf16.mxu0 0
        %1747 = vmatpush1.bf16.msra.mxu0 %v1728
        %1748 = vmatprep.subr.bf16.mxu0 0
        %1749 = vmatpush1.bf16.msra.mxu0 %v1727
        %1750 = vmatprep.subr.bf16.mxu0 0
        %1751 = vmatpush2.bf16.msra.mxu0 0
        %1752 = vmatprep.subr.bf16.mxu0 0
        %1753 = vmatpush2.bf16.msra.mxu0 0
        %1754 = vmatprep.subr.bf16.mxu0 0
        %1755 = vmatpush2.bf16.msra.mxu0 0
        %1756 = vmatprep.subr.bf16.mxu0 0
        %1757 = vmatpush2.bf16.msra.mxu0 0
        %1758 = vmatprep.subr.bf16.mxu0 0
        %1759 = vmatpush2.bf16.msra.mxu0 0
        %1760 = vmatprep.subr.bf16.mxu0 0
        %1761 = vmatpush2.bf16.msra.mxu0 0
        %1762 = vmatprep.subr.bf16.mxu0 0
        %1763 = vmatpush2.bf16.msra.mxu0 0
        %1764 = vmatprep.subr.bf16.mxu0 0
        %1765 = vmatpush2.bf16.msra.mxu0 0
        %1766 = vmatprep.mubr.bf16.mxu0 0
        %1767 = vmatmul.mubr.bf16.gmra.mxu0 %v1732
        %v1768 = vpop.f32.mrf.mxu0
        %v1769 = vadd.f32 %v1717, %v1768
        %v1770 = vpop.f32.mrf.mxu0
        %v1771 = vpop.f32.mrf.mxu0
        %v1772 = vpop.f32.mrf.mxu0
        %1773 = vdwg.mxu0
        %v1774 = vmax.f32 %v1769, 0.0
        %v1775 = vpack.c.bf16 %v1774, %v1774
        %v1776 = vld [vmem:[%s9] sm:$0xf]
        %v1777 = vld [vmem:[%s9 + $0x4] sm:$0xf]
        %v1778 = vld [vmem:[%s9 + $0x8] sm:$0xf]
        %v1779 = vld [vmem:[%s9 + $0xc] sm:$0xf]
        %v1780 = vld [vmem:[%s9 + $0x10] sm:$0xf]
        %v1781 = vld [vmem:[%s9 + $0x14] sm:$0xf]
        %v1782 = vld [vmem:[%s9 + $0x18] sm:$0xf]
        %v1783 = vld [vmem:[%s9 + $0x1c] sm:$0xf]
        %v1784 = vld [vmem:[%s10] sm:$0x1]
        %v1786 = vlaneseq
        %v1787 = vshrl.u32 %v1786, 7
        %v1788 = vsub.s32 0, %v1787
        %v1789 = vrot.slane %v1784, %v1788
        %v1799 = vunpack.c.l.b16 %v1776
        %v1800 = vunpack.c.l.b16 %v1777
        %v1801 = vunpack.c.l.b16 %v1778
        %v1802 = vunpack.c.l.b16 %v1779
        %v1803 = vunpack.c.l.b16 %v1780
        %v1804 = vunpack.c.l.b16 %v1781
        %v1805 = vunpack.c.l.b16 %v1782
        %v1806 = vunpack.c.l.b16 %v1783
        %v1807 = vpack.c.b16 %v1800, %v1799
        %v1808 = vpack.c.b16 %v1802, %v1801
        %v1809 = vpack.c.b16 %v1804, %v1803
        %v1810 = vpack.c.b16 %v1806, %v1805
        %vm1815 = vcmask 523264
        %v1817 = vsel %vm1815, %v1775, 0
        %1819 = vmatprep.subr.bf16.mxu0 0
        %1820 = vmatpush1.bf16.msra.mxu0 0
        %1821 = vmatprep.subr.bf16.mxu0 0
        %1822 = vmatpush1.bf16.msra.mxu0 0
        %1823 = vmatprep.subr.bf16.mxu0 0
        %1824 = vmatpush1.bf16.msra.mxu0 0
        %1825 = vmatprep.subr.bf16.mxu0 0
        %1826 = vmatpush1.bf16.msra.mxu0 0
        %1827 = vmatprep.subr.bf16.mxu0 0
        %1828 = vmatpush1.bf16.msra.mxu0 %v1810
        %1829 = vmatprep.subr.bf16.mxu0 0
        %1830 = vmatpush1.bf16.msra.mxu0 %v1809
        %1831 = vmatprep.subr.bf16.mxu0 0
        %1832 = vmatpush1.bf16.msra.mxu0 %v1808
        %1833 = vmatprep.subr.bf16.mxu0 0
        %1834 = vmatpush1.bf16.msra.mxu0 %v1807
        %1835 = vmatprep.subr.bf16.mxu0 0
        %1836 = vmatpush2.bf16.msra.mxu0 0
        %1837 = vmatprep.subr.bf16.mxu0 0
        %1838 = vmatpush2.bf16.msra.mxu0 0
        %1839 = vmatprep.subr.bf16.mxu0 0
        %1840 = vmatpush2.bf16.msra.mxu0 0
        %1841 = vmatprep.subr.bf16.mxu0 0
        %1842 = vmatpush2.bf16.msra.mxu0 0
        %1843 = vmatprep.subr.bf16.mxu0 0
        %1844 = vmatpush2.bf16.msra.mxu0 0
        %1845 = vmatprep.subr.bf16.mxu0 0
        %1846 = vmatpush2.bf16.msra.mxu0 0
        %1847 = vmatprep.subr.bf16.mxu0 0
        %1848 = vmatpush2.bf16.msra.mxu0 0
        %1849 = vmatprep.subr.bf16.mxu0 0
        %1850 = vmatpush2.bf16.msra.mxu0 0
        %1851 = vmatprep.mubr.bf16.mxu0 0
        %1852 = vmatmul.mubr.bf16.gmra.mxu0 %v1817
        %v1853 = vpop.f32.mrf.mxu0
        %v1854 = vadd.f32 %v1789, %v1853
        %v1855 = vpop.f32.mrf.mxu0
        %v1856 = vpop.f32.mrf.mxu0
        %v1857 = vpop.f32.mrf.mxu0
        %1858 = vdwg.mxu0
        %v1859 = vadd.f32 %v1706, %v1854
        %v1860 = vld [vmem:[%s11] sm:$0x1]
        %v1861 = vld [vmem:[%s12] sm:$0x1]
        %v1862 = vsel %vm540, %v1859, 0.0
        %1863 = vadd.xlane.f32.xlu0 %v1862
        %v1864 = vpop.xlane.xlu0 %1863
        %v1865 = vmul.f32 %v1864, %v1682
        %v1866 = vsub.f32 %v1859, %v1865
        %v1867 = vmul.f32 %v1866, %v1866
        %v1868 = vsel %vm540, %v1867, 0.0
        %1869 = vadd.xlane.f32.xlu0 %v1868
        %v1870 = vpop.xlane.xlu0 %1869
        %v1871 = vmul.f32 %v1870, %v1682
        %v1872 = vadd.f32 %v1871, 1e-05
        %v1873 = vrsqrt.pop %v1872
        %v1874 = vmul.f32 %v1866, %v1873
        %v1876 = vlaneseq
        %v1877 = vshrl.u32 %v1876, 7
        %v1878 = vsub.s32 0, %v1877
        %v1879 = vrot.slane %v1860, %v1878
        %v1881 = vmul.f32 %v1874, %v1879
        %v1883 = vlaneseq
        %v1884 = vshrl.u32 %v1883, 7
        %v1885 = vsub.s32 0, %v1884
        %v1886 = vrot.slane %v1861, %v1885
        %v1888 = vadd.f32 %v1881, %v1886
        %1889 = vst.msk [vmem:[%s509] sm:$0xff] %vm540, %v1888
        %s1890 = sand.u32 %s317, 1
        %s1891 = scalar_lea.sflag [#allocation4], %s1890
        %s1892 = sand.u32 %s317, 1
        %s1893 = smul.addr %s1892, 8
        %s1894 = scalar_lea.vmem [#allocation13], %s1893
        // Predicated region
        $region97: #{tpu_custom_call.1} parent=71 // pred_check
          %p1895 = pneg %p327
        $region98: #{tpu_custom_call.1} parent=71 // pred_check_branch
          %1897 = sbr.rel (%p1895) target = $region100
        $region99: #{tpu_custom_call.1} parent=71 // pred_region
          %s1899 = ssub.s32 128, 128
          %1900 = vsyncadd %s1891, %s1899
          %s1901 = smul.addr %s31, 128
          %s1902 = scalar_lea.hbm %s13, %s1901
          %s1904 = sshll.u32 %s1894, 4
          %s1905 = int_to_ptr.vmem [resolvable:$true] %s1904
          %1907 = dma.vmem_to_hbm [thread:$0]  %s1905, 128, %s1902, %s1891
        $region100: #{tpu_custom_call.1} parent=71 // pred_fallthru
          _
      $region72: #{tpu_custom_call.1} parent=5 // pred_fallthru
        _
      %p1908 = scmp.le.s32.totalorder 2, %s26
      // Predicated region
      $region101: #{tpu_custom_call.1} parent=5 // pred_check
        %p1909 = pneg %p1908
      $region102: #{tpu_custom_call.1} parent=5 // pred_check_branch
        %1911 = sbr.rel (%p1909) target = $region104
      $region103: #{tpu_custom_call.1} parent=5 // pred_region
        %s1912 = ssub.s32 %s26, 2
        // Predicated region
        $region105: #{tpu_custom_call.1} parent=103 // pred_check
          %p1913 = pneg %p333
        $region106: #{tpu_custom_call.1} parent=103 // pred_check_branch
          %1915 = sbr.rel (%p1913) target = $region108
        $region107: #{tpu_custom_call.1} parent=103 // pred_region
          %s1916 = sand.u32 %s318, 1
          %s1917 = scalar_lea.sflag [#allocation4], %s1916
          %s1918 = sand.u32 %s318, 1
          %s1919 = smul.addr %s1918, 8
          %s1920 = scalar_lea.vmem [#allocation13], %s1919
          %1921 = dma.done %s1917, 128
        $region108: #{tpu_custom_call.1} parent=103 // pred_fallthru
          _
      $region104: #{tpu_custom_call.1} parent=5 // pred_fallthru
        _
    $region6: #{tpu_custom_call.1} parent=1 // loop_footer
      %s30 = sadd.s32 1, %s26
    $region7: #{tpu_custom_call.1} parent=1 // loop_footer_branch
      %25 = sbr.rel target = $region3
    $region8: #{tpu_custom_call.1} parent=1 // loop_exit
      _
    %1922 = vsyncpa [#allocation3], 1
    %s1923 = scalar_lea.sflag [#allocation3], 1
    %1924 = vsyncpa %s1923, 1
    %1925 = vsyncpa [#allocation6], 1
    %1926 = vsyncpa [#allocation9], 1
    %1927 = vsyncpa [#allocation12], 1
    %1928 = vsyncpa [#allocation4], 1
    %s1929 = scalar_lea.sflag [#allocation4], 1
    %1930 = vsyncpa %s1929, 1

</llo_original>
